<compile_context>
chip_gen: v7x
topology: tpu7x:2x2x1
jax: 0.10.0
libtpu: 0.0.40
codegen_flags: <defaults>
</compile_context>

<pallas_src>
import functools

import jax
import jax.numpy as jnp
from jax.experimental import pallas as pl
from jax.experimental.pallas import tpu as pltpu

# ---- "config" values from the original repo ---------------------------------
ENT_DIM = 32     # config.ent_dim  (De)
REL_DIM = 32     # config.rel_dim  (Dr)
GAMMA = 6.0      # config.gamma
NORM_P = 1       # config.norm_p

TILE_B = 16      # batch rows packed into one block-diagonal MXU matmul
MAX_TILE_N = 2048


def _round_up(x, m):
    return ((x + m - 1) // m) * m


# ----------------------------- Pallas kernel ---------------------------------
def _stranse_kernel(negT_ref, w_ref, base_ref, out_ref, *, norm_p, gamma, tB, dr):
    De = negT_ref.shape[0]
    tN = negT_ref.shape[2]

    # (De, tB, tN) -> (De*tB, tN): leading-dim collapse, lane axis untouched
    # (tB == 16 == bf16 sublane pack, so this is layout-free).
    x = negT_ref[...].reshape(De * tB, tN)                       # bf16
    W = w_ref[0]                                                 # (tB*Dr, De*tB) bf16

    # Single 512-wide MXU matmul covering the whole batch tile, f32 accumulate.
    proj = jnp.dot(W, x, preferred_element_type=jnp.float32)     # (tB*Dr, tN)
    score = proj.reshape(tB, dr, tN) + base_ref[...]             # (tB, Dr, tN) f32

    a = jnp.abs(score)
    if norm_p == 1:
        nrm = jnp.sum(a, axis=1)                                 # (tB, tN)
    elif norm_p == 2:
        nrm = jnp.sqrt(jnp.sum(a * a, axis=1))
    else:
        nrm = jnp.sum(a ** norm_p, axis=1) ** (1.0 / norm_p)

    out_ref[...] = nrm - gamma


def _call_kernel(negT, w_blkdiag, base_col, tB, tN):
    De, Bp, Np = negT.shape
    G = w_blkdiag.shape[0]
    Dr = w_blkdiag.shape[1] // tB
    grid = (G, Np // tN)

    kernel = functools.partial(_stranse_kernel, norm_p=NORM_P, gamma=GAMMA,
                               tB=tB, dr=Dr)

    flops = int(2 * Bp * Dr * (tB * De) * Np + 4 * Bp * Dr * Np)
    bytes_accessed = int(negT.size * 2 + w_blkdiag.size * 2 +
                         base_col.size * 4 + Bp * Np * 4)

    return pl.pallas_call(
        kernel,
        out_shape=jax.ShapeDtypeStruct((Bp, Np), jnp.float32),
        grid_spec=pltpu.PrefetchScalarGridSpec(
            num_scalar_prefetch=0,
            grid=grid,
            in_specs=[
                # candidates, lane-dense in N, tiled over (B, N)
                pl.BlockSpec((De, tB, tN), lambda i, j: (0, i, j)),
                # per-B-tile block-diagonal weight (only depends on i)
                pl.BlockSpec((1, tB * Dr, De * tB), lambda i, j: (i, 0, 0)),
                # per-B base term (only depends on i)
                pl.BlockSpec((tB, Dr, 1), lambda i, j: (i, 0, 0)),
            ],
            out_specs=pl.BlockSpec((tB, tN), lambda i, j: (i, j)),
        ),
        compiler_params=pltpu.CompilerParams(
            dimension_semantics=("parallel", "parallel"),
            vmem_limit_bytes=32 * 1024 * 1024),
        cost_estimate=pl.CostEstimate(
            flops=flops, transcendentals=0, bytes_accessed=bytes_accessed),
    )(negT, w_blkdiag, base_col)


# ------------------------------- glue / params -------------------------------
def xavier_uniform(key, shape, dtype=jnp.float32):
    fan_out, fan_in = shape                      # torch convention for 2-D weight
    bound = (6.0 / (fan_in + fan_out)) ** 0.5
    return jax.random.uniform(key, shape, dtype, minval=-bound, maxval=bound)


def renorm_rows(w, max_norm, norm_type):
    """Mimics nn.Embedding(max_norm=..., norm_type=...) lookup-time renorm."""
    if norm_type == 1:
        n = jnp.sum(jnp.abs(w), axis=-1, keepdims=True)
    else:
        n = jnp.sum(jnp.abs(w) ** norm_type, axis=-1,
                    keepdims=True) ** (1.0 / norm_type)
    scale = jnp.minimum(1.0, max_norm / jnp.maximum(n, 1e-7))
    return w * scale


def _gather_embeddings(params, pos_sample):
    ent = params["ent_embd"]                                   # (E, De)
    rel = renorm_rows(params["rel_embd"], 1.0, 2)              # max_norm=1.0, L2
    h = jnp.take(ent, pos_sample[:, 0], axis=0)                # (B, De)
    r = jnp.take(rel, pos_sample[:, 1], axis=0)                # (B, Dr)
    t = jnp.take(ent, pos_sample[:, 2], axis=0)                # (B, De)
    M1 = jnp.take(params["mr1"], pos_sample[:, 1], axis=0).reshape(-1, REL_DIM, ENT_DIM)
    M2 = jnp.take(params["mr2"], pos_sample[:, 1], axis=0).reshape(-1, REL_DIM, ENT_DIM)
    return ent, h, r, t, M1, M2


def _norm(score, p):
    a = jnp.abs(score)
    if p == 1:
        return jnp.sum(a, axis=-1)
    if p == 2:
        return jnp.sqrt(jnp.sum(a * a, axis=-1))
    return jnp.sum(a ** p, axis=-1) ** (1.0 / p)


def stranse_forward(params, pos_sample, neg_sample=None, mode=None):
    ent, h, r, t, M1, M2 = _gather_embeddings(params, pos_sample)
    B = pos_sample.shape[0]

    if neg_sample is None:
        # Positive triple: a tiny (B, Dr) matvec + norm -> plain JAX, no kernel.
        mr_h = jnp.einsum('brd,bd->br', M1, h)
        mr_t = jnp.einsum('brd,bd->br', M2, t)
        score = (mr_h + r - mr_t)[:, None, :]                  # (B, 1, Dr)
        return _norm(score, NORM_P) - GAMMA                    # (B, 1)

    if mode not in ("head-batch", "tail-batch"):
        raise ValueError("mode %s not supported" % mode)

    neg_idx = neg_sample.astype(jnp.int32)                     # (B, N)
    N = neg_idx.shape[1]

    # Base term in f32; sign folded for tail-batch (L_p norm is sign-invariant),
    # so the kernel always computes |proj + base|.
    if mode == "head-batch":
        m_neg = M1
        base = r - jnp.einsum('brd,bd->br', M2, t)             # (B, Dr)
    else:
        m_neg = M2
        base = -(jnp.einsum('brd,bd->br', M1, h) + r)          # (B, Dr)

    tB = TILE_B
    tN = min(MAX_TILE_N, _round_up(N, 128))
    Bp = _round_up(B, tB)
    Np = _round_up(N, tN)
    G = Bp // tB

    neg_idx_p = jnp.zeros((Bp, Np), jnp.int32).at[:B, :N].set(neg_idx)

    # Gather candidates from the pre-transposed bf16 entity table: the gather
    # output (De, Bp, Np) is already lane-dense in N -> no HBM relayout pass.
    # TODO(synk): for very large entity tables, DMA-gather rows inside the
    # kernel (scalar-prefetch indices + memory_space=pl.ANY) instead.
    entT_bf = ent.astype(jnp.bfloat16).T                       # (De, E)
    negT = jnp.take(entT_bf, neg_idx_p, axis=1)                # (De, Bp, Np)

    def pad_b(x):
        pad = [(0, Bp - B)] + [(0, 0)] * (x.ndim - 1)
        return jnp.pad(x, pad)

    # Pack the tB per-batch (Dr, De) matrices into one block-diagonal
    # (tB*Dr, De*tB) weight per batch tile. Columns are ordered (d-major,
    # b-minor) to match the kernel's (De, tB, tN) -> (De*tB, tN) collapse;
    # rows are (b-major, r-minor) so the result splits back to (tB, Dr, tN).
    m_g = pad_b(m_neg).reshape(G, tB, REL_DIM, ENT_DIM)        # f32
    eye = jnp.eye(tB, dtype=m_g.dtype)
    w_blkdiag = (m_g[:, :, :, :, None] * eye[:, None, None, :]
                 ).reshape(G, tB * REL_DIM, ENT_DIM * tB).astype(jnp.bfloat16)

    base_col = pad_b(base).astype(jnp.float32)[:, :, None]     # (Bp, Dr, 1)

    out = _call_kernel(negT, w_blkdiag, base_col, tB, tN)
    return out[:B, :N]


# --------------------- pure-JAX reference (same bf16 casts) ------------------
def stranse_reference(params, pos_sample, neg_sample=None, mode=None):
    ent, h, r, t, M1, M2 = _gather_embeddings(params, pos_sample)

    if neg_sample is None:
        mr_h = jnp.einsum('brd,bd->br', M1, h)
        mr_t = jnp.einsum('brd,bd->br', M2, t)
        score = (mr_h + r - mr_t)[:, None, :]
        return _norm(score, NORM_P) - GAMMA

    ent_bf = ent.astype(jnp.bfloat16)
    neg = jnp.take(ent_bf, neg_sample, axis=0)                 # (B, N, De) bf16
    if mode == "head-batch":
        proj = jnp.einsum('brd,bnd->bnr', M1.astype(jnp.bfloat16), neg,
                          preferred_element_type=jnp.float32)
        base = r - jnp.einsum('brd,bd->br', M2, t)
        score = proj + base[:, None, :]
    else:
        proj = jnp.einsum('brd,bnd->bnr', M2.astype(jnp.bfloat16), neg,
                          preferred_element_type=jnp.float32)
        base = jnp.einsum('brd,bd->br', M1, h) + r
        score = base[:, None, :] - proj
    return _norm(score, NORM_P) - GAMMA


# ---------------------------------- main --------------------------------------
if __name__ == "__main__":
    ENT_NUM, REL_NUM = 16, 4
    B, N = 2, 8

    key = jax.random.PRNGKey(0)
    k1, k2, k3, k4, k5, k6, k7 = jax.random.split(key, 7)

    params = {
        "ent_embd": xavier_uniform(k1, (ENT_NUM, ENT_DIM)),
        "rel_embd": xavier_uniform(k2, (REL_NUM, REL_DIM)),
        "mr1": xavier_uniform(k3, (REL_NUM, REL_DIM * ENT_DIM)),
        "mr2": xavier_uniform(k4, (REL_NUM, REL_DIM * ENT_DIM)),
    }

    heads = jax.random.randint(k5, (B,), 0, ENT_NUM)
    rels = jax.random.randint(k6, (B,), 0, REL_NUM)
    tails = jax.random.randint(k7, (B,), 0, ENT_NUM)
    pos_sample = jnp.stack([heads, rels, tails], axis=1).astype(jnp.int32)
    neg_sample = jax.random.randint(jax.random.PRNGKey(42), (B, N), 0,
                                    ENT_NUM).astype(jnp.int32)

    out_head = stranse_forward(params, pos_sample, neg_sample, "head-batch")
    out_tail = stranse_forward(params, pos_sample, neg_sample, "tail-batch")
    out_pos = stranse_forward(params, pos_sample)
    jax.block_until_ready((out_head, out_tail, out_pos))

    ref_head = stranse_reference(params, pos_sample, neg_sample, "head-batch")
    ref_tail = stranse_reference(params, pos_sample, neg_sample, "tail-batch")
    ref_pos = stranse_reference(params, pos_sample)

    assert out_head.shape == (B, N) and out_tail.shape == (B, N)
    assert out_pos.shape == (B, 1)
    assert jnp.allclose(out_head, ref_head, atol=1e-4, rtol=1e-4)
    assert jnp.allclose(out_tail, ref_tail, atol=1e-4, rtol=1e-4)
    assert jnp.allclose(out_pos, ref_pos, atol=1e-4, rtol=1e-4)

    print("KERNEL_OK")
</pallas_src>

<mosaic_0001>
module attributes {stable_mosaic.version = 11 : i64} {
  func.func @_stranse_kernel(%arg0: i32, %arg1: i32, %arg2: memref<32x16x128xbf16, #tpu.memory_space<vmem>>, %arg3: memref<1x512x512xbf16, #tpu.memory_space<vmem>>, %arg4: memref<16x32x1xf32, #tpu.memory_space<vmem>>, %arg5: memref<16x128xf32, #tpu.memory_space<vmem>>) attributes {dimension_semantics = [#tpu.dimension_semantics<parallel>, #tpu.dimension_semantics<parallel>], iteration_bounds = array<i64: 1, 1>, scalar_prefetch = 0 : i64, scratch_operands = 0 : i64, tpu.core_type = #tpu.core_type<tc>, window_params = [{transform_indices = @transform_0, window_bounds = array<i64: 32, 16, 128>}, {transform_indices = @transform_1, window_bounds = array<i64: 1, 512, 512>}, {transform_indices = @transform_2, window_bounds = array<i64: 16, 32, 1>}, {transform_indices = @transform_3, window_bounds = array<i64: 16, 128>}]} {
    %c0 = arith.constant 0 : index
    %c0_0 = arith.constant 0 : index
    %c0_1 = arith.constant 0 : index
    %0 = vector.load %arg2[%c0, %c0_0, %c0_1] : memref<32x16x128xbf16, #tpu.memory_space<vmem>>, vector<32x16x128xbf16>
    %1 = vector.shape_cast %0 : vector<32x16x128xbf16> to vector<512x128xbf16>
    %c0_2 = arith.constant 0 : index
    %c0_3 = arith.constant 0 : index
    %c0_4 = arith.constant 0 : index
    %2 = vector.load %arg3[%c0_2, %c0_3, %c0_4] : memref<1x512x512xbf16, #tpu.memory_space<vmem>>, vector<1x512x512xbf16>
    %3 = vector.shape_cast %2 : vector<1x512x512xbf16> to vector<512x512xbf16>
    %cst = arith.constant dense<0.000000e+00> : vector<512x128xf32>
    %4 = tpu.matmul %3, %1, %cst {dimension_numbers = #tpu.dot_dimension_numbers<[1], [0], [0], [1], [0, 0, 1, 1], [], []>} : vector<512x512xbf16>, vector<512x128xbf16>, vector<512x128xf32> -> vector<512x128xf32>
    %5 = vector.shape_cast %4 : vector<512x128xf32> to vector<16x32x128xf32>
    %c0_5 = arith.constant 0 : index
    %c0_6 = arith.constant 0 : index
    %c0_7 = arith.constant 0 : index
    %6 = vector.load %arg4[%c0_5, %c0_6, %c0_7] : memref<16x32x1xf32, #tpu.memory_space<vmem>>, vector<16x32x1xf32>
    %7 = vector.broadcast %6 : vector<16x32x1xf32> to vector<16x32x128xf32>
    %8 = arith.addf %5, %7 : vector<16x32x128xf32>
    %9 = math.absf %8 : vector<16x32x128xf32>
    %cst_8 = arith.constant dense<0.000000e+00> : vector<16x128xf32>
    %10 = vector.multi_reduction <add>, %9, %cst_8 [1] : vector<16x32x128xf32> to vector<16x128xf32>
    %cst_9 = arith.constant 6.000000e+00 : f32
    %11 = vector.broadcast %cst_9 : f32 to vector<16x128xf32>
    %12 = arith.subf %10, %11 : vector<16x128xf32>
    %c0_10 = arith.constant 0 : index
    %c0_11 = arith.constant 0 : index
    %13 = vector.load %arg5[%c0_10, %c0_11] : memref<16x128xf32, #tpu.memory_space<vmem>>, vector<16x128xf32>
    tpu.vector_store %arg5[%c0_10, %c0_11], %12 {strides = array<i32>} : memref<16x128xf32, #tpu.memory_space<vmem>>, vector<16x128xf32>,
    return
  }
  func.func @transform_0(%arg0: i32, %arg1: i32) -> (i32, i32, i32) {
    %c0_i32 = arith.constant 0 : i32
    %c0_i32_0 = arith.constant 0 : i32
    return %c0_i32, %arg0, %arg1 : i32, i32, i32
  }
  func.func @transform_1(%arg0: i32, %arg1: i32) -> (i32, i32, i32) {
    %c0_i32 = arith.constant 0 : i32
    %c0_i32_0 = arith.constant 0 : i32
    %c0_i32_1 = arith.constant 0 : i32
    return %arg0, %c0_i32, %c0_i32_0 : i32, i32, i32
  }
  func.func @transform_2(%arg0: i32, %arg1: i32) -> (i32, i32, i32) {
    %c0_i32 = arith.constant 0 : i32
    %c0_i32_0 = arith.constant 0 : i32
    %c0_i32_1 = arith.constant 0 : i32
    return %arg0, %c0_i32, %c0_i32_0 : i32, i32, i32
  }
  func.func @transform_3(%arg0: i32, %arg1: i32) -> (i32, i32) {
    %c0_i32 = arith.constant 0 : i32
    return %arg0, %arg1 : i32, i32
  }
}

</mosaic_0001>

<llo_original>
// kernel: tpu_custom_call.1
$region0: #{tpu_custom_call.1}
  #allocation0 [shape = 'u32[]', space=smem, size = 0x4, offset = 0x4, fixed_abs, tag = 'smem constant byte address 0x4 - core index']
  #allocation1 [shape = 'u32[144,128]{1,0:T(1,128)}', space=vmem, size = 0x12000, scoped, tag = 'internal scratch']
  %s0 = inlined_call_operand.vmem [shape: bf16[32,16,128], index: 0, kind: input, shape index: {}]
  %s1 = inlined_call_operand.hbm [shape: bf16[1,512,512], index: 1, kind: input, shape index: {}]
  %s2 = inlined_call_operand.vmem [shape: f32[16,32,1], index: 2, kind: input, shape index: {}]
  %s3 = inlined_call_operand.hbm [shape: f32[16,128], index: 3, kind: output, shape index: {}]
  %s4 = sld [smem:[#allocation0]]
  $region26: #{tpu_custom_call.1} parent=0
    _
  %s6 = ssub.s32 1, %s4
  %s7 = scalar_select 0, %s6, %s4
  $region1: #{tpu_custom_call.1} parent=0
    #allocation2 [shape = 'u8[524288]{0}', space=vmem, size = 0x80000, scoped, tag = 'input window, operand 1, single buffered']
    #allocation3 [shape = 's32[1]{0}', space=sflag, size = 0x4, scoped, tag = 'scoped memory for tpu_custom_call.1']
    #allocation4 [shape = 's32[1]{0}', space=sflag, size = 0x4, scoped, tag = 'scoped memory for tpu_custom_call.1']
    #allocation5 [shape = 'u8[8192]{0}', space=vmem, size = 0x2000, scoped, tag = 'output window, operand 0, single buffered']
    %8 = vsyncpa [#allocation3], 0
    %9 = vsyncpa [#allocation4], 0
    // Predicated region
    $region2: #{tpu_custom_call.1} parent=1 // pred_check
      _
    $region3: #{tpu_custom_call.1} parent=1 // pred_check_branch
      %11 = sbr.rel (0) target = $region5
    $region4: #{tpu_custom_call.1} parent=1 // pred_region
      _
    $region5: #{tpu_custom_call.1} parent=1 // pred_fallthru
      _
    // Predicated region
    $region6: #{tpu_custom_call.1} parent=1 // pred_check
      _
    $region7: #{tpu_custom_call.1} parent=1 // pred_check_branch
      %13 = sbr.rel (0) target = $region9
    $region8: #{tpu_custom_call.1} parent=1 // pred_region
      %s15 = ssub.s32 16384, 16384
      %16 = vsyncadd [#allocation3], %s15
      %s17 = sshll.u32 [#allocation2], 4
      %s18 = int_to_ptr.vmem [resolvable:$true] %s17
      %23 = dma.hbm_to_vmem [thread:$0]  %s1, 16384, %s18, [#allocation3], 256, 256, 16
    $region9: #{tpu_custom_call.1} parent=1 // pred_fallthru
      _
    // Predicated region
    $region10: #{tpu_custom_call.1} parent=1 // pred_check
      _
    $region11: #{tpu_custom_call.1} parent=1 // pred_check_branch
      %25 = sbr.rel (0) target = $region13
    $region12: #{tpu_custom_call.1} parent=1 // pred_region
      _
    $region13: #{tpu_custom_call.1} parent=1 // pred_fallthru
      _
    // Predicated region
    $region14: #{tpu_custom_call.1} parent=1 // pred_check
      _
    $region15: #{tpu_custom_call.1} parent=1 // pred_check_branch
      %27 = sbr.rel (0) target = $region17
    $region16: #{tpu_custom_call.1} parent=1 // pred_region
      %28 = dma.done [#allocation3], 16384
    $region17: #{tpu_custom_call.1} parent=1 // pred_fallthru
      _
    %v30 = vld [vmem:[%s0] sm:$0xf]
    %v31 = vld [vmem:[%s0 + $0x4] sm:$0xf]
    %v32 = vld [vmem:[%s0 + $0x8] sm:$0xf]
    %v33 = vld [vmem:[%s0 + $0xc] sm:$0xf]
    %v34 = vld [vmem:[%s0 + $0x10] sm:$0xf]
    %v35 = vld [vmem:[%s0 + $0x14] sm:$0xf]
    %v36 = vld [vmem:[%s0 + $0x18] sm:$0xf]
    %v37 = vld [vmem:[%s0 + $0x1c] sm:$0xf]
    %v38 = vld [vmem:[%s0 + $0x20] sm:$0xf]
    %v39 = vld [vmem:[%s0 + $0x24] sm:$0xf]
    %v40 = vld [vmem:[%s0 + $0x28] sm:$0xf]
    %v41 = vld [vmem:[%s0 + $0x2c] sm:$0xf]
    %v42 = vld [vmem:[%s0 + $0x30] sm:$0xf]
    %v43 = vld [vmem:[%s0 + $0x34] sm:$0xf]
    %v44 = vld [vmem:[%s0 + $0x38] sm:$0xf]
    %v45 = vld [vmem:[%s0 + $0x3c] sm:$0xf]
    %v46 = vld [vmem:[%s0 + $0x40] sm:$0xf]
    %v47 = vld [vmem:[%s0 + $0x44] sm:$0xf]
    %v48 = vld [vmem:[%s0 + $0x48] sm:$0xf]
    %v49 = vld [vmem:[%s0 + $0x4c] sm:$0xf]
    %v50 = vld [vmem:[%s0 + $0x50] sm:$0xf]
    %v51 = vld [vmem:[%s0 + $0x54] sm:$0xf]
    %v52 = vld [vmem:[%s0 + $0x58] sm:$0xf]
    %v53 = vld [vmem:[%s0 + $0x5c] sm:$0xf]
    %v54 = vld [vmem:[%s0 + $0x60] sm:$0xf]
    %v55 = vld [vmem:[%s0 + $0x64] sm:$0xf]
    %v56 = vld [vmem:[%s0 + $0x68] sm:$0xf]
    %v57 = vld [vmem:[%s0 + $0x6c] sm:$0xf]
    %v58 = vld [vmem:[%s0 + $0x70] sm:$0xf]
    %v59 = vld [vmem:[%s0 + $0x74] sm:$0xf]
    %v60 = vld [vmem:[%s0 + $0x78] sm:$0xf]
    %v61 = vld [vmem:[%s0 + $0x7c] sm:$0xf]
    %v62 = vld [vmem:[%s0 + $0x80] sm:$0xf]
    %v63 = vld [vmem:[%s0 + $0x84] sm:$0xf]
    %v64 = vld [vmem:[%s0 + $0x88] sm:$0xf]
    %v65 = vld [vmem:[%s0 + $0x8c] sm:$0xf]
    %v66 = vld [vmem:[%s0 + $0x90] sm:$0xf]
    %v67 = vld [vmem:[%s0 + $0x94] sm:$0xf]
    %v68 = vld [vmem:[%s0 + $0x98] sm:$0xf]
    %v69 = vld [vmem:[%s0 + $0x9c] sm:$0xf]
    %v70 = vld [vmem:[%s0 + $0xa0] sm:$0xf]
    %v71 = vld [vmem:[%s0 + $0xa4] sm:$0xf]
    %v72 = vld [vmem:[%s0 + $0xa8] sm:$0xf]
    %v73 = vld [vmem:[%s0 + $0xac] sm:$0xf]
    %v74 = vld [vmem:[%s0 + $0xb0] sm:$0xf]
    %v75 = vld [vmem:[%s0 + $0xb4] sm:$0xf]
    %v76 = vld [vmem:[%s0 + $0xb8] sm:$0xf]
    %v77 = vld [vmem:[%s0 + $0xbc] sm:$0xf]
    %v78 = vld [vmem:[%s0 + $0xc0] sm:$0xf]
    %v79 = vld [vmem:[%s0 + $0xc4] sm:$0xf]
    %v80 = vld [vmem:[%s0 + $0xc8] sm:$0xf]
    %v81 = vld [vmem:[%s0 + $0xcc] sm:$0xf]
    %v82 = vld [vmem:[%s0 + $0xd0] sm:$0xf]
    %v83 = vld [vmem:[%s0 + $0xd4] sm:$0xf]
    %v84 = vld [vmem:[%s0 + $0xd8] sm:$0xf]
    %v85 = vld [vmem:[%s0 + $0xdc] sm:$0xf]
    %v86 = vld [vmem:[%s0 + $0xe0] sm:$0xf]
    %v87 = vld [vmem:[%s0 + $0xe4] sm:$0xf]
    %v88 = vld [vmem:[%s0 + $0xe8] sm:$0xf]
    %v89 = vld [vmem:[%s0 + $0xec] sm:$0xf]
    %v90 = vld [vmem:[%s0 + $0xf0] sm:$0xf]
    %v91 = vld [vmem:[%s0 + $0xf4] sm:$0xf]
    %v92 = vld [vmem:[%s0 + $0xf8] sm:$0xf]
    %v93 = vld [vmem:[%s0 + $0xfc] sm:$0xf]
    %v94 = vld [vmem:[#allocation2] sm:$0xff]
    %v95 = vld [vmem:[#allocation2 + $0x8] sm:$0xff]
    %v96 = vld [vmem:[#allocation2 + $0x10] sm:$0xff]
    %v97 = vld [vmem:[#allocation2 + $0x18] sm:$0xff]
    %v98 = vld [vmem:[#allocation2 + $0x20] sm:$0xff]
    %v99 = vld [vmem:[#allocation2 + $0x28] sm:$0xff]
    %v100 = vld [vmem:[#allocation2 + $0x30] sm:$0xff]
    %v101 = vld [vmem:[#allocation2 + $0x38] sm:$0xff]
    %v102 = vld [vmem:[#allocation2 + $0x40] sm:$0xff]
    %v103 = vld [vmem:[#allocation2 + $0x48] sm:$0xff]
    %v104 = vld [vmem:[#allocation2 + $0x50] sm:$0xff]
    %v105 = vld [vmem:[#allocation2 + $0x58] sm:$0xff]
    %v106 = vld [vmem:[#allocation2 + $0x60] sm:$0xff]
    %v107 = vld [vmem:[#allocation2 + $0x68] sm:$0xff]
    %v108 = vld [vmem:[#allocation2 + $0x70] sm:$0xff]
    %v109 = vld [vmem:[#allocation2 + $0x78] sm:$0xff]
    %v110 = vld [vmem:[#allocation2 + $0x80] sm:$0xff]
    %v111 = vld [vmem:[#allocation2 + $0x88] sm:$0xff]
    %v112 = vld [vmem:[#allocation2 + $0x90] sm:$0xff]
    %v113 = vld [vmem:[#allocation2 + $0x98] sm:$0xff]
    %v114 = vld [vmem:[#allocation2 + $0xa0] sm:$0xff]
    %v115 = vld [vmem:[#allocation2 + $0xa8] sm:$0xff]
    %v116 = vld [vmem:[#allocation2 + $0xb0] sm:$0xff]
    %v117 = vld [vmem:[#allocation2 + $0xb8] sm:$0xff]
    %v118 = vld [vmem:[#allocation2 + $0xc0] sm:$0xff]
    %v119 = vld [vmem:[#allocation2 + $0xc8] sm:$0xff]
    %v120 = vld [vmem:[#allocation2 + $0xd0] sm:$0xff]
    %v121 = vld [vmem:[#allocation2 + $0xd8] sm:$0xff]
    %v122 = vld [vmem:[#allocation2 + $0xe0] sm:$0xff]
    %v123 = vld [vmem:[#allocation2 + $0xe8] sm:$0xff]
    %v124 = vld [vmem:[#allocation2 + $0xf0] sm:$0xff]
    %v125 = vld [vmem:[#allocation2 + $0xf8] sm:$0xff]
    %v126 = vld [vmem:[#allocation2 + $0x100] sm:$0xff]
    %v127 = vld [vmem:[#allocation2 + $0x108] sm:$0xff]
    %v128 = vld [vmem:[#allocation2 + $0x110] sm:$0xff]
    %v129 = vld [vmem:[#allocation2 + $0x118] sm:$0xff]
    %v130 = vld [vmem:[#allocation2 + $0x120] sm:$0xff]
    %v131 = vld [vmem:[#allocation2 + $0x128] sm:$0xff]
    %v132 = vld [vmem:[#allocation2 + $0x130] sm:$0xff]
    %v133 = vld [vmem:[#allocation2 + $0x138] sm:$0xff]
    %v134 = vld [vmem:[#allocation2 + $0x140] sm:$0xff]
    %v135 = vld [vmem:[#allocation2 + $0x148] sm:$0xff]
    %v136 = vld [vmem:[#allocation2 + $0x150] sm:$0xff]
    %v137 = vld [vmem:[#allocation2 + $0x158] sm:$0xff]
    %v138 = vld [vmem:[#allocation2 + $0x160] sm:$0xff]
    %v139 = vld [vmem:[#allocation2 + $0x168] sm:$0xff]
    %v140 = vld [vmem:[#allocation2 + $0x170] sm:$0xff]
    %v141 = vld [vmem:[#allocation2 + $0x178] sm:$0xff]
    %v142 = vld [vmem:[#allocation2 + $0x180] sm:$0xff]
    %v143 = vld [vmem:[#allocation2 + $0x188] sm:$0xff]
    %v144 = vld [vmem:[#allocation2 + $0x190] sm:$0xff]
    %v145 = vld [vmem:[#allocation2 + $0x198] sm:$0xff]
    %v146 = vld [vmem:[#allocation2 + $0x1a0] sm:$0xff]
    %v147 = vld [vmem:[#allocation2 + $0x1a8] sm:$0xff]
    %v148 = vld [vmem:[#allocation2 + $0x1b0] sm:$0xff]
    %v149 = vld [vmem:[#allocation2 + $0x1b8] sm:$0xff]
    %v150 = vld [vmem:[#allocation2 + $0x1c0] sm:$0xff]
    %v151 = vld [vmem:[#allocation2 + $0x1c8] sm:$0xff]
    %v152 = vld [vmem:[#allocation2 + $0x1d0] sm:$0xff]
    %v153 = vld [vmem:[#allocation2 + $0x1d8] sm:$0xff]
    %v154 = vld [vmem:[#allocation2 + $0x1e0] sm:$0xff]
    %v155 = vld [vmem:[#allocation2 + $0x1e8] sm:$0xff]
    %v156 = vld [vmem:[#allocation2 + $0x1f0] sm:$0xff]
    %v157 = vld [vmem:[#allocation2 + $0x1f8] sm:$0xff]
    %v158 = vld [vmem:[#allocation2 + $0x200] sm:$0xff]
    %v159 = vld [vmem:[#allocation2 + $0x208] sm:$0xff]
    %v160 = vld [vmem:[#allocation2 + $0x210] sm:$0xff]
    %v161 = vld [vmem:[#allocation2 + $0x218] sm:$0xff]
    %v162 = vld [vmem:[#allocation2 + $0x220] sm:$0xff]
    %v163 = vld [vmem:[#allocation2 + $0x228] sm:$0xff]
    %v164 = vld [vmem:[#allocation2 + $0x230] sm:$0xff]
    %v165 = vld [vmem:[#allocation2 + $0x238] sm:$0xff]
    %v166 = vld [vmem:[#allocation2 + $0x240] sm:$0xff]
    %v167 = vld [vmem:[#allocation2 + $0x248] sm:$0xff]
    %v168 = vld [vmem:[#allocation2 + $0x250] sm:$0xff]
    %v169 = vld [vmem:[#allocation2 + $0x258] sm:$0xff]
    %v170 = vld [vmem:[#allocation2 + $0x260] sm:$0xff]
    %v171 = vld [vmem:[#allocation2 + $0x268] sm:$0xff]
    %v172 = vld [vmem:[#allocation2 + $0x270] sm:$0xff]
    %v173 = vld [vmem:[#allocation2 + $0x278] sm:$0xff]
    %v174 = vld [vmem:[#allocation2 + $0x280] sm:$0xff]
    %v175 = vld [vmem:[#allocation2 + $0x288] sm:$0xff]
    %v176 = vld [vmem:[#allocation2 + $0x290] sm:$0xff]
    %v177 = vld [vmem:[#allocation2 + $0x298] sm:$0xff]
    %v178 = vld [vmem:[#allocation2 + $0x2a0] sm:$0xff]
    %v179 = vld [vmem:[#allocation2 + $0x2a8] sm:$0xff]
    %v180 = vld [vmem:[#allocation2 + $0x2b0] sm:$0xff]
    %v181 = vld [vmem:[#allocation2 + $0x2b8] sm:$0xff]
    %v182 = vld [vmem:[#allocation2 + $0x2c0] sm:$0xff]
    %v183 = vld [vmem:[#allocation2 + $0x2c8] sm:$0xff]
    %v184 = vld [vmem:[#allocation2 + $0x2d0] sm:$0xff]
    %v185 = vld [vmem:[#allocation2 + $0x2d8] sm:$0xff]
    %v186 = vld [vmem:[#allocation2 + $0x2e0] sm:$0xff]
    %v187 = vld [vmem:[#allocation2 + $0x2e8] sm:$0xff]
    %v188 = vld [vmem:[#allocation2 + $0x2f0] sm:$0xff]
    %v189 = vld [vmem:[#allocation2 + $0x2f8] sm:$0xff]
    %v190 = vld [vmem:[#allocation2 + $0x300] sm:$0xff]
    %v191 = vld [vmem:[#allocation2 + $0x308] sm:$0xff]
    %v192 = vld [vmem:[#allocation2 + $0x310] sm:$0xff]
    %v193 = vld [vmem:[#allocation2 + $0x318] sm:$0xff]
    %v194 = vld [vmem:[#allocation2 + $0x320] sm:$0xff]
    %v195 = vld [vmem:[#allocation2 + $0x328] sm:$0xff]
    %v196 = vld [vmem:[#allocation2 + $0x330] sm:$0xff]
    %v197 = vld [vmem:[#allocation2 + $0x338] sm:$0xff]
    %v198 = vld [vmem:[#allocation2 + $0x340] sm:$0xff]
    %v199 = vld [vmem:[#allocation2 + $0x348] sm:$0xff]
    %v200 = vld [vmem:[#allocation2 + $0x350] sm:$0xff]
    %v201 = vld [vmem:[#allocation2 + $0x358] sm:$0xff]
    %v202 = vld [vmem:[#allocation2 + $0x360] sm:$0xff]
    %v203 = vld [vmem:[#allocation2 + $0x368] sm:$0xff]
    %v204 = vld [vmem:[#allocation2 + $0x370] sm:$0xff]
    %v205 = vld [vmem:[#allocation2 + $0x378] sm:$0xff]
    %v206 = vld [vmem:[#allocation2 + $0x380] sm:$0xff]
    %v207 = vld [vmem:[#allocation2 + $0x388] sm:$0xff]
    %v208 = vld [vmem:[#allocation2 + $0x390] sm:$0xff]
    %v209 = vld [vmem:[#allocation2 + $0x398] sm:$0xff]
    %v210 = vld [vmem:[#allocation2 + $0x3a0] sm:$0xff]
    %v211 = vld [vmem:[#allocation2 + $0x3a8] sm:$0xff]
    %v212 = vld [vmem:[#allocation2 + $0x3b0] sm:$0xff]
    %v213 = vld [vmem:[#allocation2 + $0x3b8] sm:$0xff]
    %v214 = vld [vmem:[#allocation2 + $0x3c0] sm:$0xff]
    %v215 = vld [vmem:[#allocation2 + $0x3c8] sm:$0xff]
    %v216 = vld [vmem:[#allocation2 + $0x3d0] sm:$0xff]
    %v217 = vld [vmem:[#allocation2 + $0x3d8] sm:$0xff]
    %v218 = vld [vmem:[#allocation2 + $0x3e0] sm:$0xff]
    %v219 = vld [vmem:[#allocation2 + $0x3e8] sm:$0xff]
    %v220 = vld [vmem:[#allocation2 + $0x3f0] sm:$0xff]
    %v221 = vld [vmem:[#allocation2 + $0x3f8] sm:$0xff]
    %v350 = vunpack.c.l.b16 %v94
    %v351 = vunpack.c.h.b16 %v94
    %v352 = vunpack.c.l.b16 %v95
    %v353 = vunpack.c.h.b16 %v95
    %v354 = vunpack.c.l.b16 %v96
    %v355 = vunpack.c.h.b16 %v96
    %v356 = vunpack.c.l.b16 %v97
    %v357 = vunpack.c.h.b16 %v97
    %v358 = vunpack.c.l.b16 %v98
    %v359 = vunpack.c.h.b16 %v98
    %v360 = vunpack.c.l.b16 %v99
    %v361 = vunpack.c.h.b16 %v99
    %v362 = vunpack.c.l.b16 %v100
    %v363 = vunpack.c.h.b16 %v100
    %v364 = vunpack.c.l.b16 %v101
    %v365 = vunpack.c.h.b16 %v101
    %v366 = vunpack.c.l.b16 %v102
    %v367 = vunpack.c.h.b16 %v102
    %v368 = vunpack.c.l.b16 %v103
    %v369 = vunpack.c.h.b16 %v103
    %v370 = vunpack.c.l.b16 %v104
    %v371 = vunpack.c.h.b16 %v104
    %v372 = vunpack.c.l.b16 %v105
    %v373 = vunpack.c.h.b16 %v105
    %v374 = vunpack.c.l.b16 %v106
    %v375 = vunpack.c.h.b16 %v106
    %v376 = vunpack.c.l.b16 %v107
    %v377 = vunpack.c.h.b16 %v107
    %v378 = vunpack.c.l.b16 %v108
    %v379 = vunpack.c.h.b16 %v108
    %v380 = vunpack.c.l.b16 %v109
    %v381 = vunpack.c.h.b16 %v109
    %v382 = vunpack.c.l.b16 %v110
    %v383 = vunpack.c.h.b16 %v110
    %v384 = vunpack.c.l.b16 %v111
    %v385 = vunpack.c.h.b16 %v111
    %v386 = vunpack.c.l.b16 %v112
    %v387 = vunpack.c.h.b16 %v112
    %v388 = vunpack.c.l.b16 %v113
    %v389 = vunpack.c.h.b16 %v113
    %v390 = vunpack.c.l.b16 %v114
    %v391 = vunpack.c.h.b16 %v114
    %v392 = vunpack.c.l.b16 %v115
    %v393 = vunpack.c.h.b16 %v115
    %v394 = vunpack.c.l.b16 %v116
    %v395 = vunpack.c.h.b16 %v116
    %v396 = vunpack.c.l.b16 %v117
    %v397 = vunpack.c.h.b16 %v117
    %v398 = vunpack.c.l.b16 %v118
    %v399 = vunpack.c.h.b16 %v118
    %v400 = vunpack.c.l.b16 %v119
    %v401 = vunpack.c.h.b16 %v119
    %v402 = vunpack.c.l.b16 %v120
    %v403 = vunpack.c.h.b16 %v120
    %v404 = vunpack.c.l.b16 %v121
    %v405 = vunpack.c.h.b16 %v121
    %v406 = vunpack.c.l.b16 %v122
    %v407 = vunpack.c.h.b16 %v122
    %v408 = vunpack.c.l.b16 %v123
    %v409 = vunpack.c.h.b16 %v123
    %v410 = vunpack.c.l.b16 %v124
    %v411 = vunpack.c.h.b16 %v124
    %v412 = vunpack.c.l.b16 %v125
    %v413 = vunpack.c.h.b16 %v125
    %v414 = vunpack.c.l.b16 %v126
    %v415 = vunpack.c.h.b16 %v126
    %v416 = vunpack.c.l.b16 %v127
    %v417 = vunpack.c.h.b16 %v127
    %v418 = vunpack.c.l.b16 %v128
    %v419 = vunpack.c.h.b16 %v128
    %v420 = vunpack.c.l.b16 %v129
    %v421 = vunpack.c.h.b16 %v129
    %v422 = vunpack.c.l.b16 %v130
    %v423 = vunpack.c.h.b16 %v130
    %v424 = vunpack.c.l.b16 %v131
    %v425 = vunpack.c.h.b16 %v131
    %v426 = vunpack.c.l.b16 %v132
    %v427 = vunpack.c.h.b16 %v132
    %v428 = vunpack.c.l.b16 %v133
    %v429 = vunpack.c.h.b16 %v133
    %v430 = vunpack.c.l.b16 %v134
    %v431 = vunpack.c.h.b16 %v134
    %v432 = vunpack.c.l.b16 %v135
    %v433 = vunpack.c.h.b16 %v135
    %v434 = vunpack.c.l.b16 %v136
    %v435 = vunpack.c.h.b16 %v136
    %v436 = vunpack.c.l.b16 %v137
    %v437 = vunpack.c.h.b16 %v137
    %v438 = vunpack.c.l.b16 %v138
    %v439 = vunpack.c.h.b16 %v138
    %v440 = vunpack.c.l.b16 %v139
    %v441 = vunpack.c.h.b16 %v139
    %v442 = vunpack.c.l.b16 %v140
    %v443 = vunpack.c.h.b16 %v140
    %v444 = vunpack.c.l.b16 %v141
    %v445 = vunpack.c.h.b16 %v141
    %v446 = vunpack.c.l.b16 %v142
    %v447 = vunpack.c.h.b16 %v142
    %v448 = vunpack.c.l.b16 %v143
    %v449 = vunpack.c.h.b16 %v143
    %v450 = vunpack.c.l.b16 %v144
    %v451 = vunpack.c.h.b16 %v144
    %v452 = vunpack.c.l.b16 %v145
    %v453 = vunpack.c.h.b16 %v145
    %v454 = vunpack.c.l.b16 %v146
    %v455 = vunpack.c.h.b16 %v146
    %v456 = vunpack.c.l.b16 %v147
    %v457 = vunpack.c.h.b16 %v147
    %v458 = vunpack.c.l.b16 %v148
    %v459 = vunpack.c.h.b16 %v148
    %v460 = vunpack.c.l.b16 %v149
    %v461 = vunpack.c.h.b16 %v149
    %v462 = vunpack.c.l.b16 %v150
    %v463 = vunpack.c.h.b16 %v150
    %v464 = vunpack.c.l.b16 %v151
    %v465 = vunpack.c.h.b16 %v151
    %v466 = vunpack.c.l.b16 %v152
    %v467 = vunpack.c.h.b16 %v152
    %v468 = vunpack.c.l.b16 %v153
    %v469 = vunpack.c.h.b16 %v153
    %v470 = vunpack.c.l.b16 %v154
    %v471 = vunpack.c.h.b16 %v154
    %v472 = vunpack.c.l.b16 %v155
    %v473 = vunpack.c.h.b16 %v155
    %v474 = vunpack.c.l.b16 %v156
    %v475 = vunpack.c.h.b16 %v156
    %v476 = vunpack.c.l.b16 %v157
    %v477 = vunpack.c.h.b16 %v157
    %v478 = vunpack.c.l.b16 %v158
    %v479 = vunpack.c.h.b16 %v158
    %v480 = vunpack.c.l.b16 %v159
    %v481 = vunpack.c.h.b16 %v159
    %v482 = vunpack.c.l.b16 %v160
    %v483 = vunpack.c.h.b16 %v160
    %v484 = vunpack.c.l.b16 %v161
    %v485 = vunpack.c.h.b16 %v161
    %v486 = vunpack.c.l.b16 %v162
    %v487 = vunpack.c.h.b16 %v162
    %v488 = vunpack.c.l.b16 %v163
    %v489 = vunpack.c.h.b16 %v163
    %v490 = vunpack.c.l.b16 %v164
    %v491 = vunpack.c.h.b16 %v164
    %v492 = vunpack.c.l.b16 %v165
    %v493 = vunpack.c.h.b16 %v165
    %v494 = vunpack.c.l.b16 %v166
    %v495 = vunpack.c.h.b16 %v166
    %v496 = vunpack.c.l.b16 %v167
    %v497 = vunpack.c.h.b16 %v167
    %v498 = vunpack.c.l.b16 %v168
    %v499 = vunpack.c.h.b16 %v168
    %v500 = vunpack.c.l.b16 %v169
    %v501 = vunpack.c.h.b16 %v169
    %v502 = vunpack.c.l.b16 %v170
    %v503 = vunpack.c.h.b16 %v170
    %v504 = vunpack.c.l.b16 %v171
    %v505 = vunpack.c.h.b16 %v171
    %v506 = vunpack.c.l.b16 %v172
    %v507 = vunpack.c.h.b16 %v172
    %v508 = vunpack.c.l.b16 %v173
    %v509 = vunpack.c.h.b16 %v173
    %v510 = vunpack.c.l.b16 %v174
    %v511 = vunpack.c.h.b16 %v174
    %v512 = vunpack.c.l.b16 %v175
    %v513 = vunpack.c.h.b16 %v175
    %v514 = vunpack.c.l.b16 %v176
    %v515 = vunpack.c.h.b16 %v176
    %v516 = vunpack.c.l.b16 %v177
    %v517 = vunpack.c.h.b16 %v177
    %v518 = vunpack.c.l.b16 %v178
    %v519 = vunpack.c.h.b16 %v178
    %v520 = vunpack.c.l.b16 %v179
    %v521 = vunpack.c.h.b16 %v179
    %v522 = vunpack.c.l.b16 %v180
    %v523 = vunpack.c.h.b16 %v180
    %v524 = vunpack.c.l.b16 %v181
    %v525 = vunpack.c.h.b16 %v181
    %v526 = vunpack.c.l.b16 %v182
    %v527 = vunpack.c.h.b16 %v182
    %v528 = vunpack.c.l.b16 %v183
    %v529 = vunpack.c.h.b16 %v183
    %v530 = vunpack.c.l.b16 %v184
    %v531 = vunpack.c.h.b16 %v184
    %v532 = vunpack.c.l.b16 %v185
    %v533 = vunpack.c.h.b16 %v185
    %v534 = vunpack.c.l.b16 %v186
    %v535 = vunpack.c.h.b16 %v186
    %v536 = vunpack.c.l.b16 %v187
    %v537 = vunpack.c.h.b16 %v187
    %v538 = vunpack.c.l.b16 %v188
    %v539 = vunpack.c.h.b16 %v188
    %v540 = vunpack.c.l.b16 %v189
    %v541 = vunpack.c.h.b16 %v189
    %v542 = vunpack.c.l.b16 %v190
    %v543 = vunpack.c.h.b16 %v190
    %v544 = vunpack.c.l.b16 %v191
    %v545 = vunpack.c.h.b16 %v191
    %v546 = vunpack.c.l.b16 %v192
    %v547 = vunpack.c.h.b16 %v192
    %v548 = vunpack.c.l.b16 %v193
    %v549 = vunpack.c.h.b16 %v193
    %v550 = vunpack.c.l.b16 %v194
    %v551 = vunpack.c.h.b16 %v194
    %v552 = vunpack.c.l.b16 %v195
    %v553 = vunpack.c.h.b16 %v195
    %v554 = vunpack.c.l.b16 %v196
    %v555 = vunpack.c.h.b16 %v196
    %v556 = vunpack.c.l.b16 %v197
    %v557 = vunpack.c.h.b16 %v197
    %v558 = vunpack.c.l.b16 %v198
    %v559 = vunpack.c.h.b16 %v198
    %v560 = vunpack.c.l.b16 %v199
    %v561 = vunpack.c.h.b16 %v199
    %v562 = vunpack.c.l.b16 %v200
    %v563 = vunpack.c.h.b16 %v200
    %v564 = vunpack.c.l.b16 %v201
    %v565 = vunpack.c.h.b16 %v201
    %v566 = vunpack.c.l.b16 %v202
    %v567 = vunpack.c.h.b16 %v202
    %v568 = vunpack.c.l.b16 %v203
    %v569 = vunpack.c.h.b16 %v203
    %v570 = vunpack.c.l.b16 %v204
    %v571 = vunpack.c.h.b16 %v204
    %v572 = vunpack.c.l.b16 %v205
    %v573 = vunpack.c.h.b16 %v205
    %v574 = vunpack.c.l.b16 %v206
    %v575 = vunpack.c.h.b16 %v206
    %v576 = vunpack.c.l.b16 %v207
    %v577 = vunpack.c.h.b16 %v207
    %v578 = vunpack.c.l.b16 %v208
    %v579 = vunpack.c.h.b16 %v208
    %v580 = vunpack.c.l.b16 %v209
    %v581 = vunpack.c.h.b16 %v209
    %v582 = vunpack.c.l.b16 %v210
    %v583 = vunpack.c.h.b16 %v210
    %v584 = vunpack.c.l.b16 %v211
    %v585 = vunpack.c.h.b16 %v211
    %v586 = vunpack.c.l.b16 %v212
    %v587 = vunpack.c.h.b16 %v212
    %v588 = vunpack.c.l.b16 %v213
    %v589 = vunpack.c.h.b16 %v213
    %v590 = vunpack.c.l.b16 %v214
    %v591 = vunpack.c.h.b16 %v214
    %v592 = vunpack.c.l.b16 %v215
    %v593 = vunpack.c.h.b16 %v215
    %v594 = vunpack.c.l.b16 %v216
    %v595 = vunpack.c.h.b16 %v216
    %v596 = vunpack.c.l.b16 %v217
    %v597 = vunpack.c.h.b16 %v217
    %v598 = vunpack.c.l.b16 %v218
    %v599 = vunpack.c.h.b16 %v218
    %v600 = vunpack.c.l.b16 %v219
    %v601 = vunpack.c.h.b16 %v219
    %v602 = vunpack.c.l.b16 %v220
    %v603 = vunpack.c.h.b16 %v220
    %v604 = vunpack.c.l.b16 %v221
    %v605 = vunpack.c.h.b16 %v221
    %v606 = vpack.c.b16 %v354, %v350
    %v607 = vpack.c.b16 %v355, %v351
    %v608 = vpack.c.b16 %v356, %v352
    %v609 = vpack.c.b16 %v357, %v353
    %v610 = vpack.c.b16 %v362, %v358
    %v611 = vpack.c.b16 %v363, %v359
    %v612 = vpack.c.b16 %v364, %v360
    %v613 = vpack.c.b16 %v365, %v361
    %v614 = vpack.c.b16 %v370, %v366
    %v615 = vpack.c.b16 %v371, %v367
    %v616 = vpack.c.b16 %v372, %v368
    %v617 = vpack.c.b16 %v373, %v369
    %v618 = vpack.c.b16 %v378, %v374
    %v619 = vpack.c.b16 %v379, %v375
    %v620 = vpack.c.b16 %v380, %v376
    %v621 = vpack.c.b16 %v381, %v377
    %v622 = vpack.c.b16 %v386, %v382
    %v623 = vpack.c.b16 %v387, %v383
    %v624 = vpack.c.b16 %v388, %v384
    %v625 = vpack.c.b16 %v389, %v385
    %v626 = vpack.c.b16 %v394, %v390
    %v627 = vpack.c.b16 %v395, %v391
    %v628 = vpack.c.b16 %v396, %v392
    %v629 = vpack.c.b16 %v397, %v393
    %v630 = vpack.c.b16 %v402, %v398
    %v631 = vpack.c.b16 %v403, %v399
    %v632 = vpack.c.b16 %v404, %v400
    %v633 = vpack.c.b16 %v405, %v401
    %v634 = vpack.c.b16 %v410, %v406
    %v635 = vpack.c.b16 %v411, %v407
    %v636 = vpack.c.b16 %v412, %v408
    %v637 = vpack.c.b16 %v413, %v409
    %v638 = vpack.c.b16 %v418, %v414
    %v639 = vpack.c.b16 %v419, %v415
    %v640 = vpack.c.b16 %v420, %v416
    %v641 = vpack.c.b16 %v421, %v417
    %v642 = vpack.c.b16 %v426, %v422
    %v643 = vpack.c.b16 %v427, %v423
    %v644 = vpack.c.b16 %v428, %v424
    %v645 = vpack.c.b16 %v429, %v425
    %v646 = vpack.c.b16 %v434, %v430
    %v647 = vpack.c.b16 %v435, %v431
    %v648 = vpack.c.b16 %v436, %v432
    %v649 = vpack.c.b16 %v437, %v433
    %v650 = vpack.c.b16 %v442, %v438
    %v651 = vpack.c.b16 %v443, %v439
    %v652 = vpack.c.b16 %v444, %v440
    %v653 = vpack.c.b16 %v445, %v441
    %v654 = vpack.c.b16 %v450, %v446
    %v655 = vpack.c.b16 %v451, %v447
    %v656 = vpack.c.b16 %v452, %v448
    %v657 = vpack.c.b16 %v453, %v449
    %v658 = vpack.c.b16 %v458, %v454
    %v659 = vpack.c.b16 %v459, %v455
    %v660 = vpack.c.b16 %v460, %v456
    %v661 = vpack.c.b16 %v461, %v457
    %v662 = vpack.c.b16 %v466, %v462
    %v663 = vpack.c.b16 %v467, %v463
    %v664 = vpack.c.b16 %v468, %v464
    %v665 = vpack.c.b16 %v469, %v465
    %v666 = vpack.c.b16 %v474, %v470
    %v667 = vpack.c.b16 %v475, %v471
    %v668 = vpack.c.b16 %v476, %v472
    %v669 = vpack.c.b16 %v477, %v473
    %v670 = vpack.c.b16 %v482, %v478
    %v671 = vpack.c.b16 %v483, %v479
    %v672 = vpack.c.b16 %v484, %v480
    %v673 = vpack.c.b16 %v485, %v481
    %v674 = vpack.c.b16 %v490, %v486
    %v675 = vpack.c.b16 %v491, %v487
    %v676 = vpack.c.b16 %v492, %v488
    %v677 = vpack.c.b16 %v493, %v489
    %v678 = vpack.c.b16 %v498, %v494
    %v679 = vpack.c.b16 %v499, %v495
    %v680 = vpack.c.b16 %v500, %v496
    %v681 = vpack.c.b16 %v501, %v497
    %v682 = vpack.c.b16 %v506, %v502
    %v683 = vpack.c.b16 %v507, %v503
    %v684 = vpack.c.b16 %v508, %v504
    %v685 = vpack.c.b16 %v509, %v505
    %v686 = vpack.c.b16 %v514, %v510
    %v687 = vpack.c.b16 %v515, %v511
    %v688 = vpack.c.b16 %v516, %v512
    %v689 = vpack.c.b16 %v517, %v513
    %v690 = vpack.c.b16 %v522, %v518
    %v691 = vpack.c.b16 %v523, %v519
    %v692 = vpack.c.b16 %v524, %v520
    %v693 = vpack.c.b16 %v525, %v521
    %v694 = vpack.c.b16 %v530, %v526
    %v695 = vpack.c.b16 %v531, %v527
    %v696 = vpack.c.b16 %v532, %v528
    %v697 = vpack.c.b16 %v533, %v529
    %v698 = vpack.c.b16 %v538, %v534
    %v699 = vpack.c.b16 %v539, %v535
    %v700 = vpack.c.b16 %v540, %v536
    %v701 = vpack.c.b16 %v541, %v537
    %v702 = vpack.c.b16 %v546, %v542
    %v703 = vpack.c.b16 %v547, %v543
    %v704 = vpack.c.b16 %v548, %v544
    %v705 = vpack.c.b16 %v549, %v545
    %v706 = vpack.c.b16 %v554, %v550
    %v707 = vpack.c.b16 %v555, %v551
    %v708 = vpack.c.b16 %v556, %v552
    %v709 = vpack.c.b16 %v557, %v553
    %v710 = vpack.c.b16 %v562, %v558
    %v711 = vpack.c.b16 %v563, %v559
    %v712 = vpack.c.b16 %v564, %v560
    %v713 = vpack.c.b16 %v565, %v561
    %v714 = vpack.c.b16 %v570, %v566
    %v715 = vpack.c.b16 %v571, %v567
    %v716 = vpack.c.b16 %v572, %v568
    %v717 = vpack.c.b16 %v573, %v569
    %v718 = vpack.c.b16 %v578, %v574
    %v719 = vpack.c.b16 %v579, %v575
    %v720 = vpack.c.b16 %v580, %v576
    %v721 = vpack.c.b16 %v581, %v577
    %v722 = vpack.c.b16 %v586, %v582
    %v723 = vpack.c.b16 %v587, %v583
    %v724 = vpack.c.b16 %v588, %v584
    %v725 = vpack.c.b16 %v589, %v585
    %v726 = vpack.c.b16 %v594, %v590
    %v727 = vpack.c.b16 %v595, %v591
    %v728 = vpack.c.b16 %v596, %v592
    %v729 = vpack.c.b16 %v597, %v593
    %v730 = vpack.c.b16 %v602, %v598
    %v731 = vpack.c.b16 %v603, %v599
    %v732 = vpack.c.b16 %v604, %v600
    %v733 = vpack.c.b16 %v605, %v601
    %v926 = vunpack.c.l.b16 %v30
    %v927 = vunpack.c.l.b16 %v31
    %v928 = vunpack.c.l.b16 %v32
    %v929 = vunpack.c.l.b16 %v33
    %v930 = vunpack.c.l.b16 %v34
    %v931 = vunpack.c.l.b16 %v35
    %v932 = vunpack.c.l.b16 %v36
    %v933 = vunpack.c.l.b16 %v37
    %v934 = vunpack.c.l.b16 %v38
    %v935 = vunpack.c.l.b16 %v39
    %v936 = vunpack.c.l.b16 %v40
    %v937 = vunpack.c.l.b16 %v41
    %v938 = vunpack.c.l.b16 %v42
    %v939 = vunpack.c.l.b16 %v43
    %v940 = vunpack.c.l.b16 %v44
    %v941 = vunpack.c.l.b16 %v45
    %v942 = vunpack.c.l.b16 %v46
    %v943 = vunpack.c.l.b16 %v47
    %v944 = vunpack.c.l.b16 %v48
    %v945 = vunpack.c.l.b16 %v49
    %v946 = vunpack.c.l.b16 %v50
    %v947 = vunpack.c.l.b16 %v51
    %v948 = vunpack.c.l.b16 %v52
    %v949 = vunpack.c.l.b16 %v53
    %v950 = vunpack.c.l.b16 %v54
    %v951 = vunpack.c.l.b16 %v55
    %v952 = vunpack.c.l.b16 %v56
    %v953 = vunpack.c.l.b16 %v57
    %v954 = vunpack.c.l.b16 %v58
    %v955 = vunpack.c.l.b16 %v59
    %v956 = vunpack.c.l.b16 %v60
    %v957 = vunpack.c.l.b16 %v61
    %v958 = vunpack.c.l.b16 %v62
    %v959 = vunpack.c.l.b16 %v63
    %v960 = vunpack.c.l.b16 %v64
    %v961 = vunpack.c.l.b16 %v65
    %v962 = vunpack.c.l.b16 %v66
    %v963 = vunpack.c.l.b16 %v67
    %v964 = vunpack.c.l.b16 %v68
    %v965 = vunpack.c.l.b16 %v69
    %v966 = vunpack.c.l.b16 %v70
    %v967 = vunpack.c.l.b16 %v71
    %v968 = vunpack.c.l.b16 %v72
    %v969 = vunpack.c.l.b16 %v73
    %v970 = vunpack.c.l.b16 %v74
    %v971 = vunpack.c.l.b16 %v75
    %v972 = vunpack.c.l.b16 %v76
    %v973 = vunpack.c.l.b16 %v77
    %v974 = vunpack.c.l.b16 %v78
    %v975 = vunpack.c.l.b16 %v79
    %v976 = vunpack.c.l.b16 %v80
    %v977 = vunpack.c.l.b16 %v81
    %v978 = vunpack.c.l.b16 %v82
    %v979 = vunpack.c.l.b16 %v83
    %v980 = vunpack.c.l.b16 %v84
    %v981 = vunpack.c.l.b16 %v85
    %v982 = vunpack.c.l.b16 %v86
    %v983 = vunpack.c.l.b16 %v87
    %v984 = vunpack.c.l.b16 %v88
    %v985 = vunpack.c.l.b16 %v89
    %v986 = vunpack.c.l.b16 %v90
    %v987 = vunpack.c.l.b16 %v91
    %v988 = vunpack.c.l.b16 %v92
    %v989 = vunpack.c.l.b16 %v93
    %v990 = vpack.c.b16 %v927, %v926
    %v991 = vpack.c.b16 %v929, %v928
    %v992 = vpack.c.b16 %v931, %v930
    %v993 = vpack.c.b16 %v933, %v932
    %v994 = vpack.c.b16 %v935, %v934
    %v995 = vpack.c.b16 %v937, %v936
    %v996 = vpack.c.b16 %v939, %v938
    %v997 = vpack.c.b16 %v941, %v940
    %v998 = vpack.c.b16 %v943, %v942
    %v999 = vpack.c.b16 %v945, %v944
    %v1000 = vpack.c.b16 %v947, %v946
    %v1001 = vpack.c.b16 %v949, %v948
    %v1002 = vpack.c.b16 %v951, %v950
    %v1003 = vpack.c.b16 %v953, %v952
    %v1004 = vpack.c.b16 %v955, %v954
    %v1005 = vpack.c.b16 %v957, %v956
    %v1006 = vpack.c.b16 %v959, %v958
    %v1007 = vpack.c.b16 %v961, %v960
    %v1008 = vpack.c.b16 %v963, %v962
    %v1009 = vpack.c.b16 %v965, %v964
    %v1010 = vpack.c.b16 %v967, %v966
    %v1011 = vpack.c.b16 %v969, %v968
    %v1012 = vpack.c.b16 %v971, %v970
    %v1013 = vpack.c.b16 %v973, %v972
    %v1014 = vpack.c.b16 %v975, %v974
    %v1015 = vpack.c.b16 %v977, %v976
    %v1016 = vpack.c.b16 %v979, %v978
    %v1017 = vpack.c.b16 %v981, %v980
    %v1018 = vpack.c.b16 %v983, %v982
    %v1019 = vpack.c.b16 %v985, %v984
    %v1020 = vpack.c.b16 %v987, %v986
    %v1021 = vpack.c.b16 %v989, %v988
    %1054 = vmatprep.subr.bf16.mxu0 0
    %1055 = vmatpush1.bf16.msra.mxu0 %v990
    %1056 = vmatprep.subr.bf16.mxu0 0
    %1057 = vmatpush1.bf16.msra.mxu0 %v991
    %1058 = vmatprep.subr.bf16.mxu0 0
    %1059 = vmatpush1.bf16.msra.mxu0 %v992
    %1060 = vmatprep.subr.bf16.mxu0 0
    %1061 = vmatpush1.bf16.msra.mxu0 %v993
    %1062 = vmatprep.subr.bf16.mxu0 0
    %1063 = vmatpush1.bf16.msra.mxu0 %v994
    %1064 = vmatprep.subr.bf16.mxu0 0
    %1065 = vmatpush1.bf16.msra.mxu0 %v995
    %1066 = vmatprep.subr.bf16.mxu0 0
    %1067 = vmatpush1.bf16.msra.mxu0 %v996
    %1068 = vmatprep.subr.bf16.mxu0 0
    %1069 = vmatpush1.bf16.msra.mxu0 %v997
    %1070 = vmatprep.subr.bf16.mxu0 0
    %1071 = vmatpush1.bf16.msra.mxu0 %v998
    %1072 = vmatprep.subr.bf16.mxu0 0
    %1073 = vmatpush1.bf16.msra.mxu0 %v999
    %1074 = vmatprep.subr.bf16.mxu0 0
    %1075 = vmatpush1.bf16.msra.mxu0 %v1000
    %1076 = vmatprep.subr.bf16.mxu0 0
    %1077 = vmatpush1.bf16.msra.mxu0 %v1001
    %1078 = vmatprep.subr.bf16.mxu0 0
    %1079 = vmatpush1.bf16.msra.mxu0 %v1002
    %1080 = vmatprep.subr.bf16.mxu0 0
    %1081 = vmatpush1.bf16.msra.mxu0 %v1003
    %1082 = vmatprep.subr.bf16.mxu0 0
    %1083 = vmatpush1.bf16.msra.mxu0 %v1004
    %1084 = vmatprep.subr.bf16.mxu0 0
    %1085 = vmatpush1.bf16.msra.mxu0 %v1005
    %1086 = vmatprep.mubr.bf16.mxu0 %v607
    %1087 = vmatmul.mubr.bf16.gmra.mrb[0].mxu0 %v606
    %v1088 = vpop.f32.mrb[0].mxu0
    %v1089 = vadd.f32 0.0, %v1088
    %v1090 = vpop.f32.mrb[0].mxu0
    %v1091 = vpop.f32.mrb[0].mxu0
    %v1092 = vadd.f32 0.0, %v1091
    %v1093 = vpop.f32.mrb[0].mxu0
    %1094 = vmatprep.mubr.bf16.mxu0 %v611
    %1095 = vmatmul.mubr.bf16.gmra.mrb[0].mxu0 %v610
    %v1096 = vpop.f32.mrb[0].mxu0
    %v1097 = vadd.f32 0.0, %v1096
    %v1098 = vpop.f32.mrb[0].mxu0
    %v1099 = vpop.f32.mrb[0].mxu0
    %v1100 = vadd.f32 0.0, %v1099
    %v1101 = vpop.f32.mrb[0].mxu0
    %1102 = vmatprep.mubr.bf16.mxu0 %v615
    %1103 = vmatmul.mubr.bf16.gmra.mrb[0].mxu0 %v614
    %v1104 = vpop.f32.mrb[0].mxu0
    %v1105 = vadd.f32 0.0, %v1104
    %v1106 = vpop.f32.mrb[0].mxu0
    %v1107 = vpop.f32.mrb[0].mxu0
    %v1108 = vadd.f32 0.0, %v1107
    %v1109 = vpop.f32.mrb[0].mxu0
    %1110 = vmatprep.mubr.bf16.mxu0 %v619
    %1111 = vmatmul.mubr.bf16.gmra.mrb[0].mxu0 %v618
    %v1112 = vpop.f32.mrb[0].mxu0
    %v1113 = vadd.f32 0.0, %v1112
    %v1114 = vpop.f32.mrb[0].mxu0
    %v1115 = vpop.f32.mrb[0].mxu0
    %v1116 = vadd.f32 0.0, %v1115
    %v1117 = vpop.f32.mrb[0].mxu0
    %1118 = vmatprep.mubr.bf16.mxu0 %v623
    %1119 = vmatmul.mubr.bf16.gmra.mrb[0].mxu0 %v622
    %v1120 = vpop.f32.mrb[0].mxu0
    %v1121 = vadd.f32 0.0, %v1120
    %v1122 = vpop.f32.mrb[0].mxu0
    %v1123 = vpop.f32.mrb[0].mxu0
    %v1124 = vadd.f32 0.0, %v1123
    %v1125 = vpop.f32.mrb[0].mxu0
    %1126 = vmatprep.mubr.bf16.mxu0 %v627
    %1127 = vmatmul.mubr.bf16.gmra.mrb[0].mxu0 %v626
    %v1128 = vpop.f32.mrb[0].mxu0
    %v1129 = vadd.f32 0.0, %v1128
    %v1130 = vpop.f32.mrb[0].mxu0
    %v1131 = vpop.f32.mrb[0].mxu0
    %v1132 = vadd.f32 0.0, %v1131
    %v1133 = vpop.f32.mrb[0].mxu0
    %1134 = vmatprep.mubr.bf16.mxu0 %v631
    %1135 = vmatmul.mubr.bf16.gmra.mrb[0].mxu0 %v630
    %v1136 = vpop.f32.mrb[0].mxu0
    %v1137 = vadd.f32 0.0, %v1136
    %v1138 = vpop.f32.mrb[0].mxu0
    %v1139 = vpop.f32.mrb[0].mxu0
    %v1140 = vadd.f32 0.0, %v1139
    %v1141 = vpop.f32.mrb[0].mxu0
    %1142 = vmatprep.mubr.bf16.mxu0 %v635
    %1143 = vmatmul.mubr.bf16.gmra.mrb[0].mxu0 %v634
    %v1144 = vpop.f32.mrb[0].mxu0
    %v1145 = vadd.f32 0.0, %v1144
    %v1146 = vpop.f32.mrb[0].mxu0
    %v1147 = vpop.f32.mrb[0].mxu0
    %v1148 = vadd.f32 0.0, %v1147
    %v1149 = vpop.f32.mrb[0].mxu0
    %1150 = vmatprep.mubr.bf16.mxu0 %v639
    %1151 = vmatmul.mubr.bf16.gmra.mrb[0].mxu0 %v638
    %v1152 = vpop.f32.mrb[0].mxu0
    %v1153 = vadd.f32 0.0, %v1152
    %v1154 = vpop.f32.mrb[0].mxu0
    %v1155 = vpop.f32.mrb[0].mxu0
    %v1156 = vadd.f32 0.0, %v1155
    %v1157 = vpop.f32.mrb[0].mxu0
    %1158 = vmatprep.mubr.bf16.mxu0 %v643
    %1159 = vmatmul.mubr.bf16.gmra.mrb[0].mxu0 %v642
    %v1160 = vpop.f32.mrb[0].mxu0
    %v1161 = vadd.f32 0.0, %v1160
    %v1162 = vpop.f32.mrb[0].mxu0
    %v1163 = vpop.f32.mrb[0].mxu0
    %v1164 = vadd.f32 0.0, %v1163
    %v1165 = vpop.f32.mrb[0].mxu0
    %1166 = vmatprep.mubr.bf16.mxu0 %v647
    %1167 = vmatmul.mubr.bf16.gmra.mrb[0].mxu0 %v646
    %v1168 = vpop.f32.mrb[0].mxu0
    %v1169 = vadd.f32 0.0, %v1168
    %v1170 = vpop.f32.mrb[0].mxu0
    %v1171 = vpop.f32.mrb[0].mxu0
    %v1172 = vadd.f32 0.0, %v1171
    %v1173 = vpop.f32.mrb[0].mxu0
    %1174 = vmatprep.mubr.bf16.mxu0 %v651
    %1175 = vmatmul.mubr.bf16.gmra.mrb[0].mxu0 %v650
    %v1176 = vpop.f32.mrb[0].mxu0
    %v1177 = vadd.f32 0.0, %v1176
    %v1178 = vpop.f32.mrb[0].mxu0
    %v1179 = vpop.f32.mrb[0].mxu0
    %v1180 = vadd.f32 0.0, %v1179
    %v1181 = vpop.f32.mrb[0].mxu0
    %1182 = vmatprep.mubr.bf16.mxu0 %v655
    %1183 = vmatmul.mubr.bf16.gmra.mrb[0].mxu0 %v654
    %v1184 = vpop.f32.mrb[0].mxu0
    %v1185 = vadd.f32 0.0, %v1184
    %v1186 = vpop.f32.mrb[0].mxu0
    %v1187 = vpop.f32.mrb[0].mxu0
    %v1188 = vadd.f32 0.0, %v1187
    %v1189 = vpop.f32.mrb[0].mxu0
    %1190 = vmatprep.mubr.bf16.mxu0 %v659
    %1191 = vmatmul.mubr.bf16.gmra.mrb[0].mxu0 %v658
    %v1192 = vpop.f32.mrb[0].mxu0
    %v1193 = vadd.f32 0.0, %v1192
    %v1194 = vpop.f32.mrb[0].mxu0
    %v1195 = vpop.f32.mrb[0].mxu0
    %v1196 = vadd.f32 0.0, %v1195
    %v1197 = vpop.f32.mrb[0].mxu0
    %1198 = vmatprep.mubr.bf16.mxu0 %v663
    %1199 = vmatmul.mubr.bf16.gmra.mrb[0].mxu0 %v662
    %v1200 = vpop.f32.mrb[0].mxu0
    %v1201 = vadd.f32 0.0, %v1200
    %v1202 = vpop.f32.mrb[0].mxu0
    %v1203 = vpop.f32.mrb[0].mxu0
    %v1204 = vadd.f32 0.0, %v1203
    %v1205 = vpop.f32.mrb[0].mxu0
    %1206 = vmatprep.mubr.bf16.mxu0 %v667
    %1207 = vmatmul.mubr.bf16.gmra.mrb[0].mxu0 %v666
    %v1208 = vpop.f32.mrb[0].mxu0
    %v1209 = vadd.f32 0.0, %v1208
    %v1210 = vpop.f32.mrb[0].mxu0
    %v1211 = vpop.f32.mrb[0].mxu0
    %v1212 = vadd.f32 0.0, %v1211
    %v1213 = vpop.f32.mrb[0].mxu0
    %1214 = vmatprep.mubr.bf16.mxu0 %v671
    %1215 = vmatmul.mubr.bf16.gmra.mrb[0].mxu0 %v670
    %v1216 = vpop.f32.mrb[0].mxu0
    %v1217 = vadd.f32 0.0, %v1216
    %v1218 = vpop.f32.mrb[0].mxu0
    %v1219 = vpop.f32.mrb[0].mxu0
    %v1220 = vadd.f32 0.0, %v1219
    %v1221 = vpop.f32.mrb[0].mxu0
    %1222 = vmatprep.mubr.bf16.mxu0 %v675
    %1223 = vmatmul.mubr.bf16.gmra.mrb[0].mxu0 %v674
    %v1224 = vpop.f32.mrb[0].mxu0
    %v1225 = vadd.f32 0.0, %v1224
    %v1226 = vpop.f32.mrb[0].mxu0
    %v1227 = vpop.f32.mrb[0].mxu0
    %v1228 = vadd.f32 0.0, %v1227
    %v1229 = vpop.f32.mrb[0].mxu0
    %1230 = vmatprep.mubr.bf16.mxu0 %v679
    %1231 = vmatmul.mubr.bf16.gmra.mrb[0].mxu0 %v678
    %v1232 = vpop.f32.mrb[0].mxu0
    %v1233 = vadd.f32 0.0, %v1232
    %v1234 = vpop.f32.mrb[0].mxu0
    %v1235 = vpop.f32.mrb[0].mxu0
    %v1236 = vadd.f32 0.0, %v1235
    %v1237 = vpop.f32.mrb[0].mxu0
    %1238 = vmatprep.mubr.bf16.mxu0 %v683
    %1239 = vmatmul.mubr.bf16.gmra.mrb[0].mxu0 %v682
    %v1240 = vpop.f32.mrb[0].mxu0
    %v1241 = vadd.f32 0.0, %v1240
    %v1242 = vpop.f32.mrb[0].mxu0
    %v1243 = vpop.f32.mrb[0].mxu0
    %v1244 = vadd.f32 0.0, %v1243
    %v1245 = vpop.f32.mrb[0].mxu0
    %1246 = vmatprep.mubr.bf16.mxu0 %v687
    %1247 = vmatmul.mubr.bf16.gmra.mrb[0].mxu0 %v686
    %v1248 = vpop.f32.mrb[0].mxu0
    %v1249 = vadd.f32 0.0, %v1248
    %v1250 = vpop.f32.mrb[0].mxu0
    %v1251 = vpop.f32.mrb[0].mxu0
    %v1252 = vadd.f32 0.0, %v1251
    %v1253 = vpop.f32.mrb[0].mxu0
    %1254 = vmatprep.mubr.bf16.mxu0 %v691
    %1255 = vmatmul.mubr.bf16.gmra.mrb[0].mxu0 %v690
    %v1256 = vpop.f32.mrb[0].mxu0
    %v1257 = vadd.f32 0.0, %v1256
    %v1258 = vpop.f32.mrb[0].mxu0
    %v1259 = vpop.f32.mrb[0].mxu0
    %v1260 = vadd.f32 0.0, %v1259
    %v1261 = vpop.f32.mrb[0].mxu0
    %1262 = vmatprep.mubr.bf16.mxu0 %v695
    %1263 = vmatmul.mubr.bf16.gmra.mrb[0].mxu0 %v694
    %v1264 = vpop.f32.mrb[0].mxu0
    %v1265 = vadd.f32 0.0, %v1264
    %v1266 = vpop.f32.mrb[0].mxu0
    %v1267 = vpop.f32.mrb[0].mxu0
    %v1268 = vadd.f32 0.0, %v1267
    %v1269 = vpop.f32.mrb[0].mxu0
    %1270 = vmatprep.mubr.bf16.mxu0 %v699
    %1271 = vmatmul.mubr.bf16.gmra.mrb[0].mxu0 %v698
    %v1272 = vpop.f32.mrb[0].mxu0
    %v1273 = vadd.f32 0.0, %v1272
    %v1274 = vpop.f32.mrb[0].mxu0
    %v1275 = vpop.f32.mrb[0].mxu0
    %v1276 = vadd.f32 0.0, %v1275
    %v1277 = vpop.f32.mrb[0].mxu0
    %1278 = vmatprep.mubr.bf16.mxu0 %v703
    %1279 = vmatmul.mubr.bf16.gmra.mrb[0].mxu0 %v702
    %v1280 = vpop.f32.mrb[0].mxu0
    %v1281 = vadd.f32 0.0, %v1280
    %v1282 = vpop.f32.mrb[0].mxu0
    %v1283 = vpop.f32.mrb[0].mxu0
    %v1284 = vadd.f32 0.0, %v1283
    %v1285 = vpop.f32.mrb[0].mxu0
    %1286 = vmatprep.mubr.bf16.mxu0 %v707
    %1287 = vmatmul.mubr.bf16.gmra.mrb[0].mxu0 %v706
    %v1288 = vpop.f32.mrb[0].mxu0
    %v1289 = vadd.f32 0.0, %v1288
    %v1290 = vpop.f32.mrb[0].mxu0
    %v1291 = vpop.f32.mrb[0].mxu0
    %v1292 = vadd.f32 0.0, %v1291
    %v1293 = vpop.f32.mrb[0].mxu0
    %1294 = vmatprep.mubr.bf16.mxu0 %v711
    %1295 = vmatmul.mubr.bf16.gmra.mrb[0].mxu0 %v710
    %v1296 = vpop.f32.mrb[0].mxu0
    %v1297 = vadd.f32 0.0, %v1296
    %v1298 = vpop.f32.mrb[0].mxu0
    %v1299 = vpop.f32.mrb[0].mxu0
    %v1300 = vadd.f32 0.0, %v1299
    %v1301 = vpop.f32.mrb[0].mxu0
    %1302 = vmatprep.mubr.bf16.mxu0 %v715
    %1303 = vmatmul.mubr.bf16.gmra.mrb[0].mxu0 %v714
    %v1304 = vpop.f32.mrb[0].mxu0
    %v1305 = vadd.f32 0.0, %v1304
    %v1306 = vpop.f32.mrb[0].mxu0
    %v1307 = vpop.f32.mrb[0].mxu0
    %v1308 = vadd.f32 0.0, %v1307
    %v1309 = vpop.f32.mrb[0].mxu0
    %1310 = vmatprep.mubr.bf16.mxu0 %v719
    %1311 = vmatmul.mubr.bf16.gmra.mrb[0].mxu0 %v718
    %v1312 = vpop.f32.mrb[0].mxu0
    %v1313 = vadd.f32 0.0, %v1312
    %v1314 = vpop.f32.mrb[0].mxu0
    %v1315 = vpop.f32.mrb[0].mxu0
    %v1316 = vadd.f32 0.0, %v1315
    %v1317 = vpop.f32.mrb[0].mxu0
    %1318 = vmatprep.mubr.bf16.mxu0 %v723
    %1319 = vmatmul.mubr.bf16.gmra.mrb[0].mxu0 %v722
    %v1320 = vpop.f32.mrb[0].mxu0
    %v1321 = vadd.f32 0.0, %v1320
    %v1322 = vpop.f32.mrb[0].mxu0
    %v1323 = vpop.f32.mrb[0].mxu0
    %v1324 = vadd.f32 0.0, %v1323
    %v1325 = vpop.f32.mrb[0].mxu0
    %1326 = vmatprep.mubr.bf16.mxu0 %v727
    %1327 = vmatmul.mubr.bf16.gmra.mrb[0].mxu0 %v726
    %v1328 = vpop.f32.mrb[0].mxu0
    %v1329 = vadd.f32 0.0, %v1328
    %v1330 = vpop.f32.mrb[0].mxu0
    %v1331 = vpop.f32.mrb[0].mxu0
    %v1332 = vadd.f32 0.0, %v1331
    %v1333 = vpop.f32.mrb[0].mxu0
    %1334 = vmatprep.mubr.bf16.mxu0 %v731
    %1335 = vmatmul.mubr.bf16.gmra.mrb[0].mxu0 %v730
    %v1336 = vpop.f32.mrb[0].mxu0
    %v1337 = vadd.f32 0.0, %v1336
    %v1338 = vpop.f32.mrb[0].mxu0
    %v1339 = vpop.f32.mrb[0].mxu0
    %v1340 = vadd.f32 0.0, %v1339
    %v1341 = vpop.f32.mrb[0].mxu0
    %1342 = vdwg.mxu0
    %1343 = vmatprep.subr.bf16.mxu0 0
    %1344 = vmatpush1.bf16.msra.mxu0 %v1006
    %1345 = vmatprep.subr.bf16.mxu0 0
    %1346 = vmatpush1.bf16.msra.mxu0 %v1007
    %1347 = vmatprep.subr.bf16.mxu0 0
    %1348 = vmatpush1.bf16.msra.mxu0 %v1008
    %1349 = vmatprep.subr.bf16.mxu0 0
    %1350 = vmatpush1.bf16.msra.mxu0 %v1009
    %1351 = vmatprep.subr.bf16.mxu0 0
    %1352 = vmatpush1.bf16.msra.mxu0 %v1010
    %1353 = vmatprep.subr.bf16.mxu0 0
    %1354 = vmatpush1.bf16.msra.mxu0 %v1011
    %1355 = vmatprep.subr.bf16.mxu0 0
    %1356 = vmatpush1.bf16.msra.mxu0 %v1012
    %1357 = vmatprep.subr.bf16.mxu0 0
    %1358 = vmatpush1.bf16.msra.mxu0 %v1013
    %1359 = vmatprep.subr.bf16.mxu0 0
    %1360 = vmatpush1.bf16.msra.mxu0 %v1014
    %1361 = vmatprep.subr.bf16.mxu0 0
    %1362 = vmatpush1.bf16.msra.mxu0 %v1015
    %1363 = vmatprep.subr.bf16.mxu0 0
    %1364 = vmatpush1.bf16.msra.mxu0 %v1016
    %1365 = vmatprep.subr.bf16.mxu0 0
    %1366 = vmatpush1.bf16.msra.mxu0 %v1017
    %1367 = vmatprep.subr.bf16.mxu0 0
    %1368 = vmatpush1.bf16.msra.mxu0 %v1018
    %1369 = vmatprep.subr.bf16.mxu0 0
    %1370 = vmatpush1.bf16.msra.mxu0 %v1019
    %1371 = vmatprep.subr.bf16.mxu0 0
    %1372 = vmatpush1.bf16.msra.mxu0 %v1020
    %1373 = vmatprep.subr.bf16.mxu0 0
    %1374 = vmatpush1.bf16.msra.mxu0 %v1021
    %1375 = vmatprep.mubr.bf16.mxu0 %v609
    %1376 = vmatmul.mubr.bf16.gmra.mrb[0].mxu0 %v608
    %v1377 = vpop.f32.mrb[0].mxu0
    %v1378 = vadd.f32 %v1089, %v1377
    %v1379 = vpop.f32.mrb[0].mxu0
    %v1380 = vpop.f32.mrb[0].mxu0
    %v1381 = vadd.f32 %v1092, %v1380
    %v1382 = vpop.f32.mrb[0].mxu0
    %1383 = vmatprep.mubr.bf16.mxu0 %v613
    %1384 = vmatmul.mubr.bf16.gmra.mrb[0].mxu0 %v612
    %v1385 = vpop.f32.mrb[0].mxu0
    %v1386 = vadd.f32 %v1097, %v1385
    %v1387 = vpop.f32.mrb[0].mxu0
    %v1388 = vpop.f32.mrb[0].mxu0
    %v1389 = vadd.f32 %v1100, %v1388
    %v1390 = vpop.f32.mrb[0].mxu0
    %1391 = vmatprep.mubr.bf16.mxu0 %v617
    %1392 = vmatmul.mubr.bf16.gmra.mrb[0].mxu0 %v616
    %v1393 = vpop.f32.mrb[0].mxu0
    %v1394 = vadd.f32 %v1105, %v1393
    %v1395 = vpop.f32.mrb[0].mxu0
    %v1396 = vpop.f32.mrb[0].mxu0
    %v1397 = vadd.f32 %v1108, %v1396
    %v1398 = vpop.f32.mrb[0].mxu0
    %1399 = vmatprep.mubr.bf16.mxu0 %v621
    %1400 = vmatmul.mubr.bf16.gmra.mrb[0].mxu0 %v620
    %v1401 = vpop.f32.mrb[0].mxu0
    %v1402 = vadd.f32 %v1113, %v1401
    %v1403 = vpop.f32.mrb[0].mxu0
    %v1404 = vpop.f32.mrb[0].mxu0
    %v1405 = vadd.f32 %v1116, %v1404
    %v1406 = vpop.f32.mrb[0].mxu0
    %1407 = vmatprep.mubr.bf16.mxu0 %v625
    %1408 = vmatmul.mubr.bf16.gmra.mrb[0].mxu0 %v624
    %v1409 = vpop.f32.mrb[0].mxu0
    %v1410 = vadd.f32 %v1121, %v1409
    %v1411 = vpop.f32.mrb[0].mxu0
    %v1412 = vpop.f32.mrb[0].mxu0
    %v1413 = vadd.f32 %v1124, %v1412
    %v1414 = vpop.f32.mrb[0].mxu0
    %1415 = vmatprep.mubr.bf16.mxu0 %v629
    %1416 = vmatmul.mubr.bf16.gmra.mrb[0].mxu0 %v628
    %v1417 = vpop.f32.mrb[0].mxu0
    %v1418 = vadd.f32 %v1129, %v1417
    %v1419 = vpop.f32.mrb[0].mxu0
    %v1420 = vpop.f32.mrb[0].mxu0
    %v1421 = vadd.f32 %v1132, %v1420
    %v1422 = vpop.f32.mrb[0].mxu0
    %1423 = vmatprep.mubr.bf16.mxu0 %v633
    %1424 = vmatmul.mubr.bf16.gmra.mrb[0].mxu0 %v632
    %v1425 = vpop.f32.mrb[0].mxu0
    %v1426 = vadd.f32 %v1137, %v1425
    %v1427 = vpop.f32.mrb[0].mxu0
    %v1428 = vpop.f32.mrb[0].mxu0
    %v1429 = vadd.f32 %v1140, %v1428
    %v1430 = vpop.f32.mrb[0].mxu0
    %1431 = vmatprep.mubr.bf16.mxu0 %v637
    %1432 = vmatmul.mubr.bf16.gmra.mrb[0].mxu0 %v636
    %v1433 = vpop.f32.mrb[0].mxu0
    %v1434 = vadd.f32 %v1145, %v1433
    %v1435 = vpop.f32.mrb[0].mxu0
    %v1436 = vpop.f32.mrb[0].mxu0
    %v1437 = vadd.f32 %v1148, %v1436
    %v1438 = vpop.f32.mrb[0].mxu0
    %1439 = vmatprep.mubr.bf16.mxu0 %v641
    %1440 = vmatmul.mubr.bf16.gmra.mrb[0].mxu0 %v640
    %v1441 = vpop.f32.mrb[0].mxu0
    %v1442 = vadd.f32 %v1153, %v1441
    %v1443 = vpop.f32.mrb[0].mxu0
    %v1444 = vpop.f32.mrb[0].mxu0
    %v1445 = vadd.f32 %v1156, %v1444
    %v1446 = vpop.f32.mrb[0].mxu0
    %1447 = vmatprep.mubr.bf16.mxu0 %v645
    %1448 = vmatmul.mubr.bf16.gmra.mrb[0].mxu0 %v644
    %v1449 = vpop.f32.mrb[0].mxu0
    %v1450 = vadd.f32 %v1161, %v1449
    %v1451 = vpop.f32.mrb[0].mxu0
    %v1452 = vpop.f32.mrb[0].mxu0
    %v1453 = vadd.f32 %v1164, %v1452
    %v1454 = vpop.f32.mrb[0].mxu0
    %1455 = vmatprep.mubr.bf16.mxu0 %v649
    %1456 = vmatmul.mubr.bf16.gmra.mrb[0].mxu0 %v648
    %v1457 = vpop.f32.mrb[0].mxu0
    %v1458 = vadd.f32 %v1169, %v1457
    %v1459 = vpop.f32.mrb[0].mxu0
    %v1460 = vpop.f32.mrb[0].mxu0
    %v1461 = vadd.f32 %v1172, %v1460
    %v1462 = vpop.f32.mrb[0].mxu0
    %1463 = vmatprep.mubr.bf16.mxu0 %v653
    %1464 = vmatmul.mubr.bf16.gmra.mrb[0].mxu0 %v652
    %v1465 = vpop.f32.mrb[0].mxu0
    %v1466 = vadd.f32 %v1177, %v1465
    %v1467 = vpop.f32.mrb[0].mxu0
    %v1468 = vpop.f32.mrb[0].mxu0
    %v1469 = vadd.f32 %v1180, %v1468
    %v1470 = vpop.f32.mrb[0].mxu0
    %1471 = vmatprep.mubr.bf16.mxu0 %v657
    %1472 = vmatmul.mubr.bf16.gmra.mrb[0].mxu0 %v656
    %v1473 = vpop.f32.mrb[0].mxu0
    %v1474 = vadd.f32 %v1185, %v1473
    %v1475 = vpop.f32.mrb[0].mxu0
    %v1476 = vpop.f32.mrb[0].mxu0
    %v1477 = vadd.f32 %v1188, %v1476
    %v1478 = vpop.f32.mrb[0].mxu0
    %1479 = vmatprep.mubr.bf16.mxu0 %v661
    %1480 = vmatmul.mubr.bf16.gmra.mrb[0].mxu0 %v660
    %v1481 = vpop.f32.mrb[0].mxu0
    %v1482 = vadd.f32 %v1193, %v1481
    %v1483 = vpop.f32.mrb[0].mxu0
    %v1484 = vpop.f32.mrb[0].mxu0
    %v1485 = vadd.f32 %v1196, %v1484
    %v1486 = vpop.f32.mrb[0].mxu0
    %1487 = vmatprep.mubr.bf16.mxu0 %v665
    %1488 = vmatmul.mubr.bf16.gmra.mrb[0].mxu0 %v664
    %v1489 = vpop.f32.mrb[0].mxu0
    %v1490 = vadd.f32 %v1201, %v1489
    %v1491 = vpop.f32.mrb[0].mxu0
    %v1492 = vpop.f32.mrb[0].mxu0
    %v1493 = vadd.f32 %v1204, %v1492
    %v1494 = vpop.f32.mrb[0].mxu0
    %1495 = vmatprep.mubr.bf16.mxu0 %v669
    %1496 = vmatmul.mubr.bf16.gmra.mrb[0].mxu0 %v668
    %v1497 = vpop.f32.mrb[0].mxu0
    %v1498 = vadd.f32 %v1209, %v1497
    %v1499 = vpop.f32.mrb[0].mxu0
    %v1500 = vpop.f32.mrb[0].mxu0
    %v1501 = vadd.f32 %v1212, %v1500
    %v1502 = vpop.f32.mrb[0].mxu0
    %1503 = vmatprep.mubr.bf16.mxu0 %v673
    %1504 = vmatmul.mubr.bf16.gmra.mrb[0].mxu0 %v672
    %v1505 = vpop.f32.mrb[0].mxu0
    %v1506 = vadd.f32 %v1217, %v1505
    %v1507 = vpop.f32.mrb[0].mxu0
    %v1508 = vpop.f32.mrb[0].mxu0
    %v1509 = vadd.f32 %v1220, %v1508
    %v1510 = vpop.f32.mrb[0].mxu0
    %1511 = vmatprep.mubr.bf16.mxu0 %v677
    %1512 = vmatmul.mubr.bf16.gmra.mrb[0].mxu0 %v676
    %v1513 = vpop.f32.mrb[0].mxu0
    %v1514 = vadd.f32 %v1225, %v1513
    %v1515 = vpop.f32.mrb[0].mxu0
    %v1516 = vpop.f32.mrb[0].mxu0
    %v1517 = vadd.f32 %v1228, %v1516
    %v1518 = vpop.f32.mrb[0].mxu0
    %1519 = vmatprep.mubr.bf16.mxu0 %v681
    %1520 = vmatmul.mubr.bf16.gmra.mrb[0].mxu0 %v680
    %v1521 = vpop.f32.mrb[0].mxu0
    %v1522 = vadd.f32 %v1233, %v1521
    %v1523 = vpop.f32.mrb[0].mxu0
    %v1524 = vpop.f32.mrb[0].mxu0
    %v1525 = vadd.f32 %v1236, %v1524
    %v1526 = vpop.f32.mrb[0].mxu0
    %1527 = vmatprep.mubr.bf16.mxu0 %v685
    %1528 = vmatmul.mubr.bf16.gmra.mrb[0].mxu0 %v684
    %v1529 = vpop.f32.mrb[0].mxu0
    %v1530 = vadd.f32 %v1241, %v1529
    %v1531 = vpop.f32.mrb[0].mxu0
    %v1532 = vpop.f32.mrb[0].mxu0
    %v1533 = vadd.f32 %v1244, %v1532
    %v1534 = vpop.f32.mrb[0].mxu0
    %1535 = vmatprep.mubr.bf16.mxu0 %v689
    %1536 = vmatmul.mubr.bf16.gmra.mrb[0].mxu0 %v688
    %v1537 = vpop.f32.mrb[0].mxu0
    %v1538 = vadd.f32 %v1249, %v1537
    %v1539 = vpop.f32.mrb[0].mxu0
    %v1540 = vpop.f32.mrb[0].mxu0
    %v1541 = vadd.f32 %v1252, %v1540
    %v1542 = vpop.f32.mrb[0].mxu0
    %1543 = vmatprep.mubr.bf16.mxu0 %v693
    %1544 = vmatmul.mubr.bf16.gmra.mrb[0].mxu0 %v692
    %v1545 = vpop.f32.mrb[0].mxu0
    %v1546 = vadd.f32 %v1257, %v1545
    %v1547 = vpop.f32.mrb[0].mxu0
    %v1548 = vpop.f32.mrb[0].mxu0
    %v1549 = vadd.f32 %v1260, %v1548
    %v1550 = vpop.f32.mrb[0].mxu0
    %1551 = vmatprep.mubr.bf16.mxu0 %v697
    %1552 = vmatmul.mubr.bf16.gmra.mrb[0].mxu0 %v696
    %v1553 = vpop.f32.mrb[0].mxu0
    %v1554 = vadd.f32 %v1265, %v1553
    %v1555 = vpop.f32.mrb[0].mxu0
    %v1556 = vpop.f32.mrb[0].mxu0
    %v1557 = vadd.f32 %v1268, %v1556
    %v1558 = vpop.f32.mrb[0].mxu0
    %1559 = vmatprep.mubr.bf16.mxu0 %v701
    %1560 = vmatmul.mubr.bf16.gmra.mrb[0].mxu0 %v700
    %v1561 = vpop.f32.mrb[0].mxu0
    %v1562 = vadd.f32 %v1273, %v1561
    %v1563 = vpop.f32.mrb[0].mxu0
    %v1564 = vpop.f32.mrb[0].mxu0
    %v1565 = vadd.f32 %v1276, %v1564
    %v1566 = vpop.f32.mrb[0].mxu0
    %1567 = vmatprep.mubr.bf16.mxu0 %v705
    %1568 = vmatmul.mubr.bf16.gmra.mrb[0].mxu0 %v704
    %v1569 = vpop.f32.mrb[0].mxu0
    %v1570 = vadd.f32 %v1281, %v1569
    %v1571 = vpop.f32.mrb[0].mxu0
    %v1572 = vpop.f32.mrb[0].mxu0
    %v1573 = vadd.f32 %v1284, %v1572
    %v1574 = vpop.f32.mrb[0].mxu0
    %1575 = vmatprep.mubr.bf16.mxu0 %v709
    %1576 = vmatmul.mubr.bf16.gmra.mrb[0].mxu0 %v708
    %v1577 = vpop.f32.mrb[0].mxu0
    %v1578 = vadd.f32 %v1289, %v1577
    %v1579 = vpop.f32.mrb[0].mxu0
    %v1580 = vpop.f32.mrb[0].mxu0
    %v1581 = vadd.f32 %v1292, %v1580
    %v1582 = vpop.f32.mrb[0].mxu0
    %1583 = vmatprep.mubr.bf16.mxu0 %v713
    %1584 = vmatmul.mubr.bf16.gmra.mrb[0].mxu0 %v712
    %v1585 = vpop.f32.mrb[0].mxu0
    %v1586 = vadd.f32 %v1297, %v1585
    %v1587 = vpop.f32.mrb[0].mxu0
    %v1588 = vpop.f32.mrb[0].mxu0
    %v1589 = vadd.f32 %v1300, %v1588
    %v1590 = vpop.f32.mrb[0].mxu0
    %1591 = vmatprep.mubr.bf16.mxu0 %v717
    %1592 = vmatmul.mubr.bf16.gmra.mrb[0].mxu0 %v716
    %v1593 = vpop.f32.mrb[0].mxu0
    %v1594 = vadd.f32 %v1305, %v1593
    %v1595 = vpop.f32.mrb[0].mxu0
    %v1596 = vpop.f32.mrb[0].mxu0
    %v1597 = vadd.f32 %v1308, %v1596
    %v1598 = vpop.f32.mrb[0].mxu0
    %1599 = vmatprep.mubr.bf16.mxu0 %v721
    %1600 = vmatmul.mubr.bf16.gmra.mrb[0].mxu0 %v720
    %v1601 = vpop.f32.mrb[0].mxu0
    %v1602 = vadd.f32 %v1313, %v1601
    %v1603 = vpop.f32.mrb[0].mxu0
    %v1604 = vpop.f32.mrb[0].mxu0
    %v1605 = vadd.f32 %v1316, %v1604
    %v1606 = vpop.f32.mrb[0].mxu0
    %1607 = vmatprep.mubr.bf16.mxu0 %v725
    %1608 = vmatmul.mubr.bf16.gmra.mrb[0].mxu0 %v724
    %v1609 = vpop.f32.mrb[0].mxu0
    %v1610 = vadd.f32 %v1321, %v1609
    %v1611 = vpop.f32.mrb[0].mxu0
    %v1612 = vpop.f32.mrb[0].mxu0
    %v1613 = vadd.f32 %v1324, %v1612
    %v1614 = vpop.f32.mrb[0].mxu0
    %1615 = vmatprep.mubr.bf16.mxu0 %v729
    %1616 = vmatmul.mubr.bf16.gmra.mrb[0].mxu0 %v728
    %v1617 = vpop.f32.mrb[0].mxu0
    %v1618 = vadd.f32 %v1329, %v1617
    %v1619 = vpop.f32.mrb[0].mxu0
    %v1620 = vpop.f32.mrb[0].mxu0
    %v1621 = vadd.f32 %v1332, %v1620
    %v1622 = vpop.f32.mrb[0].mxu0
    %1623 = vmatprep.mubr.bf16.mxu0 %v733
    %1624 = vmatmul.mubr.bf16.gmra.mrb[0].mxu0 %v732
    %v1625 = vpop.f32.mrb[0].mxu0
    %v1626 = vadd.f32 %v1337, %v1625
    %v1627 = vpop.f32.mrb[0].mxu0
    %v1628 = vpop.f32.mrb[0].mxu0
    %v1629 = vadd.f32 %v1340, %v1628
    %v1630 = vpop.f32.mrb[0].mxu0
    %1631 = vdwg.mxu0
    %v1632 = vld [vmem:[%s2] sm:$0xff]
    %v1633 = vld [vmem:[%s2 + $0x8] sm:$0xff]
    %v1634 = vld [vmem:[%s2 + $0x10] sm:$0xff]
    %v1635 = vld [vmem:[%s2 + $0x18] sm:$0xff]
    %v1636 = vld [vmem:[%s2 + $0x20] sm:$0xff]
    %v1637 = vld [vmem:[%s2 + $0x28] sm:$0xff]
    %v1638 = vld [vmem:[%s2 + $0x30] sm:$0xff]
    %v1639 = vld [vmem:[%s2 + $0x38] sm:$0xff]
    %v1640 = vld [vmem:[%s2 + $0x40] sm:$0xff]
    %v1641 = vld [vmem:[%s2 + $0x48] sm:$0xff]
    %v1642 = vld [vmem:[%s2 + $0x50] sm:$0xff]
    %v1643 = vld [vmem:[%s2 + $0x58] sm:$0xff]
    %v1644 = vld [vmem:[%s2 + $0x60] sm:$0xff]
    %v1645 = vld [vmem:[%s2 + $0x68] sm:$0xff]
    %v1646 = vld [vmem:[%s2 + $0x70] sm:$0xff]
    %v1647 = vld [vmem:[%s2 + $0x78] sm:$0xff]
    %v1648 = vld [vmem:[%s2 + $0x80] sm:$0xff]
    %v1649 = vld [vmem:[%s2 + $0x88] sm:$0xff]
    %v1650 = vld [vmem:[%s2 + $0x90] sm:$0xff]
    %v1651 = vld [vmem:[%s2 + $0x98] sm:$0xff]
    %v1652 = vld [vmem:[%s2 + $0xa0] sm:$0xff]
    %v1653 = vld [vmem:[%s2 + $0xa8] sm:$0xff]
    %v1654 = vld [vmem:[%s2 + $0xb0] sm:$0xff]
    %v1655 = vld [vmem:[%s2 + $0xb8] sm:$0xff]
    %v1656 = vld [vmem:[%s2 + $0xc0] sm:$0xff]
    %v1657 = vld [vmem:[%s2 + $0xc8] sm:$0xff]
    %v1658 = vld [vmem:[%s2 + $0xd0] sm:$0xff]
    %v1659 = vld [vmem:[%s2 + $0xd8] sm:$0xff]
    %v1660 = vld [vmem:[%s2 + $0xe0] sm:$0xff]
    %v1661 = vld [vmem:[%s2 + $0xe8] sm:$0xff]
    %v1662 = vld [vmem:[%s2 + $0xf0] sm:$0xff]
    %v1663 = vld [vmem:[%s2 + $0xf8] sm:$0xff]
    %v1664 = vld [vmem:[%s2 + $0x100] sm:$0xff]
    %v1665 = vld [vmem:[%s2 + $0x108] sm:$0xff]
    %v1666 = vld [vmem:[%s2 + $0x110] sm:$0xff]
    %v1667 = vld [vmem:[%s2 + $0x118] sm:$0xff]
    %v1668 = vld [vmem:[%s2 + $0x120] sm:$0xff]
    %v1669 = vld [vmem:[%s2 + $0x128] sm:$0xff]
    %v1670 = vld [vmem:[%s2 + $0x130] sm:$0xff]
    %v1671 = vld [vmem:[%s2 + $0x138] sm:$0xff]
    %v1672 = vld [vmem:[%s2 + $0x140] sm:$0xff]
    %v1673 = vld [vmem:[%s2 + $0x148] sm:$0xff]
    %v1674 = vld [vmem:[%s2 + $0x150] sm:$0xff]
    %v1675 = vld [vmem:[%s2 + $0x158] sm:$0xff]
    %v1676 = vld [vmem:[%s2 + $0x160] sm:$0xff]
    %v1677 = vld [vmem:[%s2 + $0x168] sm:$0xff]
    %v1678 = vld [vmem:[%s2 + $0x170] sm:$0xff]
    %v1679 = vld [vmem:[%s2 + $0x178] sm:$0xff]
    %v1680 = vld [vmem:[%s2 + $0x180] sm:$0xff]
    %v1681 = vld [vmem:[%s2 + $0x188] sm:$0xff]
    %v1682 = vld [vmem:[%s2 + $0x190] sm:$0xff]
    %v1683 = vld [vmem:[%s2 + $0x198] sm:$0xff]
    %v1684 = vld [vmem:[%s2 + $0x1a0] sm:$0xff]
    %v1685 = vld [vmem:[%s2 + $0x1a8] sm:$0xff]
    %v1686 = vld [vmem:[%s2 + $0x1b0] sm:$0xff]
    %v1687 = vld [vmem:[%s2 + $0x1b8] sm:$0xff]
    %v1688 = vld [vmem:[%s2 + $0x1c0] sm:$0xff]
    %v1689 = vld [vmem:[%s2 + $0x1c8] sm:$0xff]
    %v1690 = vld [vmem:[%s2 + $0x1d0] sm:$0xff]
    %v1691 = vld [vmem:[%s2 + $0x1d8] sm:$0xff]
    %v1692 = vld [vmem:[%s2 + $0x1e0] sm:$0xff]
    %v1693 = vld [vmem:[%s2 + $0x1e8] sm:$0xff]
    %v1694 = vld [vmem:[%s2 + $0x1f0] sm:$0xff]
    %v1695 = vld [vmem:[%s2 + $0x1f8] sm:$0xff]
    %1697 = vset.pattern.permute.xlu0 0
    %1698 = vperm.xlu0 %1697, %v1632
    %v1699 = vpop.permute.xlu0 %1698
    %1702 = vset.pattern.permute.xlu0 0
    %1703 = vperm.xlu0 %1702, %v1633
    %v1704 = vpop.permute.xlu0 %1703
    %1707 = vset.pattern.permute.xlu0 0
    %1708 = vperm.xlu0 %1707, %v1634
    %v1709 = vpop.permute.xlu0 %1708
    %1712 = vset.pattern.permute.xlu0 0
    %1713 = vperm.xlu0 %1712, %v1635
    %v1714 = vpop.permute.xlu0 %1713
    %1717 = vset.pattern.permute.xlu0 0
    %1718 = vperm.xlu0 %1717, %v1636
    %v1719 = vpop.permute.xlu0 %1718
    %1722 = vset.pattern.permute.xlu0 0
    %1723 = vperm.xlu0 %1722, %v1637
    %v1724 = vpop.permute.xlu0 %1723
    %1727 = vset.pattern.permute.xlu0 0
    %1728 = vperm.xlu0 %1727, %v1638
    %v1729 = vpop.permute.xlu0 %1728
    %1732 = vset.pattern.permute.xlu0 0
    %1733 = vperm.xlu0 %1732, %v1639
    %v1734 = vpop.permute.xlu0 %1733
    %1737 = vset.pattern.permute.xlu0 0
    %1738 = vperm.xlu0 %1737, %v1640
    %v1739 = vpop.permute.xlu0 %1738
    %1742 = vset.pattern.permute.xlu0 0
    %1743 = vperm.xlu0 %1742, %v1641
    %v1744 = vpop.permute.xlu0 %1743
    %1747 = vset.pattern.permute.xlu0 0
    %1748 = vperm.xlu0 %1747, %v1642
    %v1749 = vpop.permute.xlu0 %1748
    %1752 = vset.pattern.permute.xlu0 0
    %1753 = vperm.xlu0 %1752, %v1643
    %v1754 = vpop.permute.xlu0 %1753
    %1757 = vset.pattern.permute.xlu0 0
    %1758 = vperm.xlu0 %1757, %v1644
    %v1759 = vpop.permute.xlu0 %1758
    %1762 = vset.pattern.permute.xlu0 0
    %1763 = vperm.xlu0 %1762, %v1645
    %v1764 = vpop.permute.xlu0 %1763
    %1767 = vset.pattern.permute.xlu0 0
    %1768 = vperm.xlu0 %1767, %v1646
    %v1769 = vpop.permute.xlu0 %1768
    %1772 = vset.pattern.permute.xlu0 0
    %1773 = vperm.xlu0 %1772, %v1647
    %v1774 = vpop.permute.xlu0 %1773
    %1777 = vset.pattern.permute.xlu0 0
    %1778 = vperm.xlu0 %1777, %v1648
    %v1779 = vpop.permute.xlu0 %1778
    %1782 = vset.pattern.permute.xlu0 0
    %1783 = vperm.xlu0 %1782, %v1649
    %v1784 = vpop.permute.xlu0 %1783
    %1787 = vset.pattern.permute.xlu0 0
    %1788 = vperm.xlu0 %1787, %v1650
    %v1789 = vpop.permute.xlu0 %1788
    %1792 = vset.pattern.permute.xlu0 0
    %1793 = vperm.xlu0 %1792, %v1651
    %v1794 = vpop.permute.xlu0 %1793
    %1797 = vset.pattern.permute.xlu0 0
    %1798 = vperm.xlu0 %1797, %v1652
    %v1799 = vpop.permute.xlu0 %1798
    %1802 = vset.pattern.permute.xlu0 0
    %1803 = vperm.xlu0 %1802, %v1653
    %v1804 = vpop.permute.xlu0 %1803
    %1807 = vset.pattern.permute.xlu0 0
    %1808 = vperm.xlu0 %1807, %v1654
    %v1809 = vpop.permute.xlu0 %1808
    %1812 = vset.pattern.permute.xlu0 0
    %1813 = vperm.xlu0 %1812, %v1655
    %v1814 = vpop.permute.xlu0 %1813
    %1817 = vset.pattern.permute.xlu0 0
    %1818 = vperm.xlu0 %1817, %v1656
    %v1819 = vpop.permute.xlu0 %1818
    %1822 = vset.pattern.permute.xlu0 0
    %1823 = vperm.xlu0 %1822, %v1657
    %v1824 = vpop.permute.xlu0 %1823
    %1827 = vset.pattern.permute.xlu0 0
    %1828 = vperm.xlu0 %1827, %v1658
    %v1829 = vpop.permute.xlu0 %1828
    %1832 = vset.pattern.permute.xlu0 0
    %1833 = vperm.xlu0 %1832, %v1659
    %v1834 = vpop.permute.xlu0 %1833
    %1837 = vset.pattern.permute.xlu0 0
    %1838 = vperm.xlu0 %1837, %v1660
    %v1839 = vpop.permute.xlu0 %1838
    %1842 = vset.pattern.permute.xlu0 0
    %1843 = vperm.xlu0 %1842, %v1661
    %v1844 = vpop.permute.xlu0 %1843
    %1847 = vset.pattern.permute.xlu0 0
    %1848 = vperm.xlu0 %1847, %v1662
    %v1849 = vpop.permute.xlu0 %1848
    %1852 = vset.pattern.permute.xlu0 0
    %1853 = vperm.xlu0 %1852, %v1663
    %v1854 = vpop.permute.xlu0 %1853
    %1857 = vset.pattern.permute.xlu0 0
    %1858 = vperm.xlu0 %1857, %v1664
    %v1859 = vpop.permute.xlu0 %1858
    %1862 = vset.pattern.permute.xlu0 0
    %1863 = vperm.xlu0 %1862, %v1665
    %v1864 = vpop.permute.xlu0 %1863
    %1867 = vset.pattern.permute.xlu0 0
    %1868 = vperm.xlu0 %1867, %v1666
    %v1869 = vpop.permute.xlu0 %1868
    %1872 = vset.pattern.permute.xlu0 0
    %1873 = vperm.xlu0 %1872, %v1667
    %v1874 = vpop.permute.xlu0 %1873
    %1877 = vset.pattern.permute.xlu0 0
    %1878 = vperm.xlu0 %1877, %v1668
    %v1879 = vpop.permute.xlu0 %1878
    %1882 = vset.pattern.permute.xlu0 0
    %1883 = vperm.xlu0 %1882, %v1669
    %v1884 = vpop.permute.xlu0 %1883
    %1887 = vset.pattern.permute.xlu0 0
    %1888 = vperm.xlu0 %1887, %v1670
    %v1889 = vpop.permute.xlu0 %1888
    %1892 = vset.pattern.permute.xlu0 0
    %1893 = vperm.xlu0 %1892, %v1671
    %v1894 = vpop.permute.xlu0 %1893
    %1897 = vset.pattern.permute.xlu0 0
    %1898 = vperm.xlu0 %1897, %v1672
    %v1899 = vpop.permute.xlu0 %1898
    %1902 = vset.pattern.permute.xlu0 0
    %1903 = vperm.xlu0 %1902, %v1673
    %v1904 = vpop.permute.xlu0 %1903
    %1907 = vset.pattern.permute.xlu0 0
    %1908 = vperm.xlu0 %1907, %v1674
    %v1909 = vpop.permute.xlu0 %1908
    %1912 = vset.pattern.permute.xlu0 0
    %1913 = vperm.xlu0 %1912, %v1675
    %v1914 = vpop.permute.xlu0 %1913
    %1917 = vset.pattern.permute.xlu0 0
    %1918 = vperm.xlu0 %1917, %v1676
    %v1919 = vpop.permute.xlu0 %1918
    %1922 = vset.pattern.permute.xlu0 0
    %1923 = vperm.xlu0 %1922, %v1677
    %v1924 = vpop.permute.xlu0 %1923
    %1927 = vset.pattern.permute.xlu0 0
    %1928 = vperm.xlu0 %1927, %v1678
    %v1929 = vpop.permute.xlu0 %1928
    %1932 = vset.pattern.permute.xlu0 0
    %1933 = vperm.xlu0 %1932, %v1679
    %v1934 = vpop.permute.xlu0 %1933
    %1937 = vset.pattern.permute.xlu0 0
    %1938 = vperm.xlu0 %1937, %v1680
    %v1939 = vpop.permute.xlu0 %1938
    %1942 = vset.pattern.permute.xlu0 0
    %1943 = vperm.xlu0 %1942, %v1681
    %v1944 = vpop.permute.xlu0 %1943
    %1947 = vset.pattern.permute.xlu0 0
    %1948 = vperm.xlu0 %1947, %v1682
    %v1949 = vpop.permute.xlu0 %1948
    %1952 = vset.pattern.permute.xlu0 0
    %1953 = vperm.xlu0 %1952, %v1683
    %v1954 = vpop.permute.xlu0 %1953
    %1957 = vset.pattern.permute.xlu0 0
    %1958 = vperm.xlu0 %1957, %v1684
    %v1959 = vpop.permute.xlu0 %1958
    %1962 = vset.pattern.permute.xlu0 0
    %1963 = vperm.xlu0 %1962, %v1685
    %v1964 = vpop.permute.xlu0 %1963
    %1967 = vset.pattern.permute.xlu0 0
    %1968 = vperm.xlu0 %1967, %v1686
    %v1969 = vpop.permute.xlu0 %1968
    %1972 = vset.pattern.permute.xlu0 0
    %1973 = vperm.xlu0 %1972, %v1687
    %v1974 = vpop.permute.xlu0 %1973
    %1977 = vset.pattern.permute.xlu0 0
    %1978 = vperm.xlu0 %1977, %v1688
    %v1979 = vpop.permute.xlu0 %1978
    %1982 = vset.pattern.permute.xlu0 0
    %1983 = vperm.xlu0 %1982, %v1689
    %v1984 = vpop.permute.xlu0 %1983
    %1987 = vset.pattern.permute.xlu0 0
    %1988 = vperm.xlu0 %1987, %v1690
    %v1989 = vpop.permute.xlu0 %1988
    %1992 = vset.pattern.permute.xlu0 0
    %1993 = vperm.xlu0 %1992, %v1691
    %v1994 = vpop.permute.xlu0 %1993
    %1997 = vset.pattern.permute.xlu0 0
    %1998 = vperm.xlu0 %1997, %v1692
    %v1999 = vpop.permute.xlu0 %1998
    %2002 = vset.pattern.permute.xlu0 0
    %2003 = vperm.xlu0 %2002, %v1693
    %v2004 = vpop.permute.xlu0 %2003
    %2007 = vset.pattern.permute.xlu0 0
    %2008 = vperm.xlu0 %2007, %v1694
    %v2009 = vpop.permute.xlu0 %2008
    %2012 = vset.pattern.permute.xlu0 0
    %2013 = vperm.xlu0 %2012, %v1695
    %v2014 = vpop.permute.xlu0 %2013
    %v2016 = vadd.f32 %v1378, %v1699
    %v2017 = vadd.f32 %v1381, %v1704
    %v2018 = vadd.f32 %v1386, %v1709
    %v2019 = vadd.f32 %v1389, %v1714
    %v2020 = vadd.f32 %v1394, %v1719
    %v2021 = vadd.f32 %v1397, %v1724
    %v2022 = vadd.f32 %v1402, %v1729
    %v2023 = vadd.f32 %v1405, %v1734
    %v2024 = vadd.f32 %v1410, %v1739
    %v2025 = vadd.f32 %v1413, %v1744
    %v2026 = vadd.f32 %v1418, %v1749
    %v2027 = vadd.f32 %v1421, %v1754
    %v2028 = vadd.f32 %v1426, %v1759
    %v2029 = vadd.f32 %v1429, %v1764
    %v2030 = vadd.f32 %v1434, %v1769
    %v2031 = vadd.f32 %v1437, %v1774
    %v2032 = vadd.f32 %v1442, %v1779
    %v2033 = vadd.f32 %v1445, %v1784
    %v2034 = vadd.f32 %v1450, %v1789
    %v2035 = vadd.f32 %v1453, %v1794
    %v2036 = vadd.f32 %v1458, %v1799
    %v2037 = vadd.f32 %v1461, %v1804
    %v2038 = vadd.f32 %v1466, %v1809
    %v2039 = vadd.f32 %v1469, %v1814
    %v2040 = vadd.f32 %v1474, %v1819
    %v2041 = vadd.f32 %v1477, %v1824
    %v2042 = vadd.f32 %v1482, %v1829
    %v2043 = vadd.f32 %v1485, %v1834
    %v2044 = vadd.f32 %v1490, %v1839
    %v2045 = vadd.f32 %v1493, %v1844
    %v2046 = vadd.f32 %v1498, %v1849
    %v2047 = vadd.f32 %v1501, %v1854
    %v2048 = vadd.f32 %v1506, %v1859
    %v2049 = vadd.f32 %v1509, %v1864
    %v2050 = vadd.f32 %v1514, %v1869
    %v2051 = vadd.f32 %v1517, %v1874
    %v2052 = vadd.f32 %v1522, %v1879
    %v2053 = vadd.f32 %v1525, %v1884
    %v2054 = vadd.f32 %v1530, %v1889
    %v2055 = vadd.f32 %v1533, %v1894
    %v2056 = vadd.f32 %v1538, %v1899
    %v2057 = vadd.f32 %v1541, %v1904
    %v2058 = vadd.f32 %v1546, %v1909
    %v2059 = vadd.f32 %v1549, %v1914
    %v2060 = vadd.f32 %v1554, %v1919
    %v2061 = vadd.f32 %v1557, %v1924
    %v2062 = vadd.f32 %v1562, %v1929
    %v2063 = vadd.f32 %v1565, %v1934
    %v2064 = vadd.f32 %v1570, %v1939
    %v2065 = vadd.f32 %v1573, %v1944
    %v2066 = vadd.f32 %v1578, %v1949
    %v2067 = vadd.f32 %v1581, %v1954
    %v2068 = vadd.f32 %v1586, %v1959
    %v2069 = vadd.f32 %v1589, %v1964
    %v2070 = vadd.f32 %v1594, %v1969
    %v2071 = vadd.f32 %v1597, %v1974
    %v2072 = vadd.f32 %v1602, %v1979
    %v2073 = vadd.f32 %v1605, %v1984
    %v2074 = vadd.f32 %v1610, %v1989
    %v2075 = vadd.f32 %v1613, %v1994
    %v2076 = vadd.f32 %v1618, %v1999
    %v2077 = vadd.f32 %v1621, %v2004
    %v2078 = vadd.f32 %v1626, %v2009
    %v2079 = vadd.f32 %v1629, %v2014
    %v2080 = vand.u32 2147483647, %v2016
    %v2081 = vand.u32 2147483647, %v2017
    %v2082 = vand.u32 2147483647, %v2018
    %v2083 = vand.u32 2147483647, %v2019
    %v2084 = vand.u32 2147483647, %v2020
    %v2085 = vand.u32 2147483647, %v2021
    %v2086 = vand.u32 2147483647, %v2022
    %v2087 = vand.u32 2147483647, %v2023
    %v2088 = vand.u32 2147483647, %v2024
    %v2089 = vand.u32 2147483647, %v2025
    %v2090 = vand.u32 2147483647, %v2026
    %v2091 = vand.u32 2147483647, %v2027
    %v2092 = vand.u32 2147483647, %v2028
    %v2093 = vand.u32 2147483647, %v2029
    %v2094 = vand.u32 2147483647, %v2030
    %v2095 = vand.u32 2147483647, %v2031
    %v2096 = vand.u32 2147483647, %v2032
    %v2097 = vand.u32 2147483647, %v2033
    %v2098 = vand.u32 2147483647, %v2034
    %v2099 = vand.u32 2147483647, %v2035
    %v2100 = vand.u32 2147483647, %v2036
    %v2101 = vand.u32 2147483647, %v2037
    %v2102 = vand.u32 2147483647, %v2038
    %v2103 = vand.u32 2147483647, %v2039
    %v2104 = vand.u32 2147483647, %v2040
    %v2105 = vand.u32 2147483647, %v2041
    %v2106 = vand.u32 2147483647, %v2042
    %v2107 = vand.u32 2147483647, %v2043
    %v2108 = vand.u32 2147483647, %v2044
    %v2109 = vand.u32 2147483647, %v2045
    %v2110 = vand.u32 2147483647, %v2046
    %v2111 = vand.u32 2147483647, %v2047
    %v2112 = vand.u32 2147483647, %v2048
    %v2113 = vand.u32 2147483647, %v2049
    %v2114 = vand.u32 2147483647, %v2050
    %v2115 = vand.u32 2147483647, %v2051
    %v2116 = vand.u32 2147483647, %v2052
    %v2117 = vand.u32 2147483647, %v2053
    %v2118 = vand.u32 2147483647, %v2054
    %v2119 = vand.u32 2147483647, %v2055
    %v2120 = vand.u32 2147483647, %v2056
    %v2121 = vand.u32 2147483647, %v2057
    %v2122 = vand.u32 2147483647, %v2058
    %v2123 = vand.u32 2147483647, %v2059
    %v2124 = vand.u32 2147483647, %v2060
    %v2125 = vand.u32 2147483647, %v2061
    %v2126 = vand.u32 2147483647, %v2062
    %v2127 = vand.u32 2147483647, %v2063
    %v2128 = vand.u32 2147483647, %v2064
    %v2129 = vand.u32 2147483647, %v2065
    %v2130 = vand.u32 2147483647, %v2066
    %v2131 = vand.u32 2147483647, %v2067
    %v2132 = vand.u32 2147483647, %v2068
    %v2133 = vand.u32 2147483647, %v2069
    %v2134 = vand.u32 2147483647, %v2070
    %v2135 = vand.u32 2147483647, %v2071
    %v2136 = vand.u32 2147483647, %v2072
    %v2137 = vand.u32 2147483647, %v2073
    %v2138 = vand.u32 2147483647, %v2074
    %v2139 = vand.u32 2147483647, %v2075
    %v2140 = vand.u32 2147483647, %v2076
    %v2141 = vand.u32 2147483647, %v2077
    %v2142 = vand.u32 2147483647, %v2078
    %v2143 = vand.u32 2147483647, %v2079
    %v2144 = vadd.f32 %v2080, %v2081
    %v2145 = vadd.f32 %v2144, %v2082
    %v2146 = vadd.f32 %v2145, %v2083
    %v2147 = vrot.slane %v2146, 4
    %v2148 = vadd.f32 %v2146, %v2147
    %v2149 = vrot.slane %v2148, 2
    %v2150 = vadd.f32 %v2148, %v2149
    %v2151 = vrot.slane %v2150, 1
    %v2152 = vadd.f32 %v2150, %v2151
    %v2153 = vadd.f32 %v2084, %v2085
    %v2154 = vadd.f32 %v2153, %v2086
    %v2155 = vadd.f32 %v2154, %v2087
    %v2156 = vrot.slane %v2155, 4
    %v2157 = vadd.f32 %v2155, %v2156
    %v2158 = vrot.slane %v2157, 2
    %v2159 = vadd.f32 %v2157, %v2158
    %v2160 = vrot.slane %v2159, 1
    %v2161 = vadd.f32 %v2159, %v2160
    %v2162 = vadd.f32 %v2088, %v2089
    %v2163 = vadd.f32 %v2162, %v2090
    %v2164 = vadd.f32 %v2163, %v2091
    %v2165 = vrot.slane %v2164, 4
    %v2166 = vadd.f32 %v2164, %v2165
    %v2167 = vrot.slane %v2166, 2
    %v2168 = vadd.f32 %v2166, %v2167
    %v2169 = vrot.slane %v2168, 1
    %v2170 = vadd.f32 %v2168, %v2169
    %v2171 = vadd.f32 %v2092, %v2093
    %v2172 = vadd.f32 %v2171, %v2094
    %v2173 = vadd.f32 %v2172, %v2095
    %v2174 = vrot.slane %v2173, 4
    %v2175 = vadd.f32 %v2173, %v2174
    %v2176 = vrot.slane %v2175, 2
    %v2177 = vadd.f32 %v2175, %v2176
    %v2178 = vrot.slane %v2177, 1
    %v2179 = vadd.f32 %v2177, %v2178
    %v2180 = vadd.f32 %v2096, %v2097
    %v2181 = vadd.f32 %v2180, %v2098
    %v2182 = vadd.f32 %v2181, %v2099
    %v2183 = vrot.slane %v2182, 4
    %v2184 = vadd.f32 %v2182, %v2183
    %v2185 = vrot.slane %v2184, 2
    %v2186 = vadd.f32 %v2184, %v2185
    %v2187 = vrot.slane %v2186, 1
    %v2188 = vadd.f32 %v2186, %v2187
    %v2189 = vadd.f32 %v2100, %v2101
    %v2190 = vadd.f32 %v2189, %v2102
    %v2191 = vadd.f32 %v2190, %v2103
    %v2192 = vrot.slane %v2191, 4
    %v2193 = vadd.f32 %v2191, %v2192
    %v2194 = vrot.slane %v2193, 2
    %v2195 = vadd.f32 %v2193, %v2194
    %v2196 = vrot.slane %v2195, 1
    %v2197 = vadd.f32 %v2195, %v2196
    %v2198 = vadd.f32 %v2104, %v2105
    %v2199 = vadd.f32 %v2198, %v2106
    %v2200 = vadd.f32 %v2199, %v2107
    %v2201 = vrot.slane %v2200, 4
    %v2202 = vadd.f32 %v2200, %v2201
    %v2203 = vrot.slane %v2202, 2
    %v2204 = vadd.f32 %v2202, %v2203
    %v2205 = vrot.slane %v2204, 1
    %v2206 = vadd.f32 %v2204, %v2205
    %v2207 = vadd.f32 %v2108, %v2109
    %v2208 = vadd.f32 %v2207, %v2110
    %v2209 = vadd.f32 %v2208, %v2111
    %v2210 = vrot.slane %v2209, 4
    %v2211 = vadd.f32 %v2209, %v2210
    %v2212 = vrot.slane %v2211, 2
    %v2213 = vadd.f32 %v2211, %v2212
    %v2214 = vrot.slane %v2213, 1
    %v2215 = vadd.f32 %v2213, %v2214
    %v2216 = vadd.f32 %v2112, %v2113
    %v2217 = vadd.f32 %v2216, %v2114
    %v2218 = vadd.f32 %v2217, %v2115
    %v2219 = vrot.slane %v2218, 4
    %v2220 = vadd.f32 %v2218, %v2219
    %v2221 = vrot.slane %v2220, 2
    %v2222 = vadd.f32 %v2220, %v2221
    %v2223 = vrot.slane %v2222, 1
    %v2224 = vadd.f32 %v2222, %v2223
    %v2225 = vadd.f32 %v2116, %v2117
    %v2226 = vadd.f32 %v2225, %v2118
    %v2227 = vadd.f32 %v2226, %v2119
    %v2228 = vrot.slane %v2227, 4
    %v2229 = vadd.f32 %v2227, %v2228
    %v2230 = vrot.slane %v2229, 2
    %v2231 = vadd.f32 %v2229, %v2230
    %v2232 = vrot.slane %v2231, 1
    %v2233 = vadd.f32 %v2231, %v2232
    %v2234 = vadd.f32 %v2120, %v2121
    %v2235 = vadd.f32 %v2234, %v2122
    %v2236 = vadd.f32 %v2235, %v2123
    %v2237 = vrot.slane %v2236, 4
    %v2238 = vadd.f32 %v2236, %v2237
    %v2239 = vrot.slane %v2238, 2
    %v2240 = vadd.f32 %v2238, %v2239
    %v2241 = vrot.slane %v2240, 1
    %v2242 = vadd.f32 %v2240, %v2241
    %v2243 = vadd.f32 %v2124, %v2125
    %v2244 = vadd.f32 %v2243, %v2126
    %v2245 = vadd.f32 %v2244, %v2127
    %v2246 = vrot.slane %v2245, 4
    %v2247 = vadd.f32 %v2245, %v2246
    %v2248 = vrot.slane %v2247, 2
    %v2249 = vadd.f32 %v2247, %v2248
    %v2250 = vrot.slane %v2249, 1
    %v2251 = vadd.f32 %v2249, %v2250
    %v2252 = vadd.f32 %v2128, %v2129
    %v2253 = vadd.f32 %v2252, %v2130
    %v2254 = vadd.f32 %v2253, %v2131
    %v2255 = vrot.slane %v2254, 4
    %v2256 = vadd.f32 %v2254, %v2255
    %v2257 = vrot.slane %v2256, 2
    %v2258 = vadd.f32 %v2256, %v2257
    %v2259 = vrot.slane %v2258, 1
    %v2260 = vadd.f32 %v2258, %v2259
    %v2261 = vadd.f32 %v2132, %v2133
    %v2262 = vadd.f32 %v2261, %v2134
    %v2263 = vadd.f32 %v2262, %v2135
    %v2264 = vrot.slane %v2263, 4
    %v2265 = vadd.f32 %v2263, %v2264
    %v2266 = vrot.slane %v2265, 2
    %v2267 = vadd.f32 %v2265, %v2266
    %v2268 = vrot.slane %v2267, 1
    %v2269 = vadd.f32 %v2267, %v2268
    %v2270 = vadd.f32 %v2136, %v2137
    %v2271 = vadd.f32 %v2270, %v2138
    %v2272 = vadd.f32 %v2271, %v2139
    %v2273 = vrot.slane %v2272, 4
    %v2274 = vadd.f32 %v2272, %v2273
    %v2275 = vrot.slane %v2274, 2
    %v2276 = vadd.f32 %v2274, %v2275
    %v2277 = vrot.slane %v2276, 1
    %v2278 = vadd.f32 %v2276, %v2277
    %v2279 = vadd.f32 %v2140, %v2141
    %v2280 = vadd.f32 %v2279, %v2142
    %v2281 = vadd.f32 %v2280, %v2143
    %v2282 = vrot.slane %v2281, 4
    %v2283 = vadd.f32 %v2281, %v2282
    %v2284 = vrot.slane %v2283, 2
    %v2285 = vadd.f32 %v2283, %v2284
    %v2286 = vrot.slane %v2285, 1
    %v2287 = vadd.f32 %v2285, %v2286
    %v2288 = vsub.f32 %v2152, 6.0
    %v2289 = vsub.f32 %v2161, 6.0
    %v2290 = vsub.f32 %v2170, 6.0
    %v2291 = vsub.f32 %v2179, 6.0
    %v2292 = vsub.f32 %v2188, 6.0
    %v2293 = vsub.f32 %v2197, 6.0
    %v2294 = vsub.f32 %v2206, 6.0
    %v2295 = vsub.f32 %v2215, 6.0
    %v2296 = vsub.f32 %v2224, 6.0
    %v2297 = vsub.f32 %v2233, 6.0
    %v2298 = vsub.f32 %v2242, 6.0
    %v2299 = vsub.f32 %v2251, 6.0
    %v2300 = vsub.f32 %v2260, 6.0
    %v2301 = vsub.f32 %v2269, 6.0
    %v2302 = vsub.f32 %v2278, 6.0
    %v2303 = vsub.f32 %v2287, 6.0
    %vm2320 = vcmask 1041409
    %v2321 = vsel %vm2320, %v2289, %v2288
    %vm2322 = vcmask 1042434
    %v2323 = vsel %vm2322, %v2290, %v2321
    %vm2324 = vcmask 1043459
    %v2325 = vsel %vm2324, %v2291, %v2323
    %vm2326 = vcmask 1044484
    %v2327 = vsel %vm2326, %v2292, %v2325
    %vm2328 = vcmask 1045509
    %v2329 = vsel %vm2328, %v2293, %v2327
    %vm2330 = vcmask 1046534
    %v2331 = vsel %vm2330, %v2294, %v2329
    %vm2332 = vcmask 1047559
    %v2333 = vsel %vm2332, %v2295, %v2331
    %v2334 = vsel %vm2320, %v2297, %v2296
    %v2335 = vsel %vm2322, %v2298, %v2334
    %v2336 = vsel %vm2324, %v2299, %v2335
    %v2337 = vsel %vm2326, %v2300, %v2336
    %v2338 = vsel %vm2328, %v2301, %v2337
    %v2339 = vsel %vm2330, %v2302, %v2338
    %v2340 = vsel %vm2332, %v2303, %v2339
    %2343 = vst [vmem:[#allocation5] sm:$0xff] %v2333
    %2344 = vst [vmem:[#allocation5 + $0x8] sm:$0xff] %v2340
    // Predicated region
    $region18: #{tpu_custom_call.1} parent=1 // pred_check
      _
    $region19: #{tpu_custom_call.1} parent=1 // pred_check_branch
      %2346 = sbr.rel (0) target = $region21
    $region20: #{tpu_custom_call.1} parent=1 // pred_region
      %s2348 = ssub.s32 256, 256
      %2349 = vsyncadd [#allocation4], %s2348
      %s2350 = sshll.u32 [#allocation5], 4
      %s2351 = int_to_ptr.vmem [resolvable:$true] %s2350
      %2356 = dma.vmem_to_hbm [thread:$0]  %s2351, 256, %s3, [#allocation4], 128, 128, 8
    $region21: #{tpu_custom_call.1} parent=1 // pred_fallthru
      _
    // Predicated region
    $region22: #{tpu_custom_call.1} parent=1 // pred_check
      _
    $region23: #{tpu_custom_call.1} parent=1 // pred_check_branch
      %2358 = sbr.rel (0) target = $region25
    $region24: #{tpu_custom_call.1} parent=1 // pred_region
      %2359 = dma.done [#allocation4], 256
    $region25: #{tpu_custom_call.1} parent=1 // pred_fallthru
      _
    %2360 = vsyncpa [#allocation3], 1
    %2361 = vsyncpa [#allocation4], 1

</llo_original>
